<compile_context>
chip_gen: v7x
topology: tpu7x:2x2x1
jax: 0.10.0
libtpu: 0.0.40
codegen_flags: <defaults>
</compile_context>

<pallas_src>
import functools

import jax
import jax.numpy as jnp
from jax.experimental import pallas as pl
from jax.experimental.pallas import tpu as pltpu

POSE_DIM = 24 * 6                 # 144
TRAN_DIM = 3
FUSED_DIM = POSE_DIM + TRAN_DIM   # 147
FEAT_DIM = 2048
N_PAD = 256                       # lane-dense fused output width (multiple of 128)


def _round_up(v, m):
    return (v + m - 1) // m * m


def fuse_params(w_pose, b_pose, w_tran, b_tran):
    """One-time fusion of the two Linear heads (call at param-load time).

    Weights are stored as (F, N), i.e. transposed vs. PyTorch nn.Linear's (N, F).
    Returns (w_fused_bf16 (2048, 256), b_fused_f32 (1, 256)).
    """
    w_fused = jnp.zeros((FEAT_DIM, N_PAD), jnp.float32)
    w_fused = w_fused.at[:, :POSE_DIM].set(w_pose)
    w_fused = w_fused.at[:, POSE_DIM:FUSED_DIM].set(w_tran)
    b_fused = jnp.zeros((1, N_PAD), jnp.float32)
    b_fused = b_fused.at[0, :POSE_DIM].set(b_pose)
    b_fused = b_fused.at[0, POSE_DIM:FUSED_DIM].set(b_tran)
    return w_fused.astype(jnp.bfloat16), b_fused


def _regressor_kernel(x_ref, w_ref, b_ref, out_ref):
    # x: (tm, 2048) f32  | w: (2048, 256) bf16 resident | b: (1, 256) f32 resident
    x_bf = x_ref[...].astype(jnp.bfloat16)               # in-kernel cast (VPU, hidden)
    acc = jnp.dot(x_bf, w_ref[...],
                  preferred_element_type=jnp.float32)    # single MXU pass
    out_ref[...] = acc + b_ref[...]                      # f32 epilogue, unmasked 256-wide store


@functools.partial(jax.jit, static_argnames=("tile_m",))
def regressor_forward(x, w_fused_bf16, b_fused, *, tile_m=1024):
    """x: (B, T, 2048) f32/bf16 -> (delta_pose (B, T, 144), delta_tran (B, T, 3))."""
    B, T, F = x.shape
    assert F == FEAT_DIM
    M = B * T
    x2d = x.reshape(M, FEAT_DIM)

    # --- Tile selection (all static under jit) ------------------------------
    if M >= 2 * tile_m:
        tm = tile_m                               # large M: stream 1024-row tiles
    elif M >= 32:
        tm = _round_up(pl.cdiv(M, 2), 16)         # moderate M: >= 2 tiles for both v7x TCs
    else:
        tm = max(16, _round_up(M, 16))            # tiny M: one tile, 16-row (bf16 vreg) aligned
    n_tiles = pl.cdiv(M, tm)                      # ragged last block is masked by Pallas

    cost = pl.CostEstimate(
        flops=2 * n_tiles * tm * FEAT_DIM * N_PAD,
        transcendentals=0,
        bytes_accessed=(M * FEAT_DIM * x2d.dtype.itemsize   # x read (single pass)
                        + FEAT_DIM * N_PAD * 2               # fused bf16 weight
                        + N_PAD * 4                          # bias
                        + M * N_PAD * 4),                    # f32 output writeback
    )

    out = pl.pallas_call(
        _regressor_kernel,
        out_shape=jax.ShapeDtypeStruct((M, N_PAD), jnp.float32),
        grid_spec=pltpu.PrefetchScalarGridSpec(
            num_scalar_prefetch=0,
            grid=(n_tiles,),
            in_specs=[
                pl.BlockSpec((tm, FEAT_DIM), lambda i: (i, 0)),        # x row tiles (pipelined)
                pl.BlockSpec((FEAT_DIM, N_PAD), lambda i: (0, 0),
                             pipeline_mode=pl.Buffered(1)),            # resident weight, 1 buffer
                pl.BlockSpec((1, N_PAD), lambda i: (0, 0),
                             pipeline_mode=pl.Buffered(1)),            # resident bias, 1 buffer
            ],
            out_specs=pl.BlockSpec((tm, N_PAD), lambda i: (i, 0)),
        ),
        compiler_params=pltpu.CompilerParams(
            dimension_semantics=("parallel",),    # shard M tiles across v7x's two TensorCores
        ),
        cost_estimate=cost,
    )(x2d, w_fused_bf16, b_fused)

    # Module semantics: split the fused lane-dense slab back into the two heads.
    # (Consumers that can take the fused (M, 256) slab directly should, to skip this pass.)
    delta_pose = out[:, :POSE_DIM].reshape(B, T, POSE_DIM)
    delta_tran = out[:, POSE_DIM:FUSED_DIM].reshape(B, T, TRAN_DIM)
    return delta_pose, delta_tran


def init_params(key):
    """Deterministic init mirroring nn.Linear's U(-1/sqrt(fan_in), 1/sqrt(fan_in))."""
    k1, k2, k3, k4 = jax.random.split(key, 4)
    bound = 1.0 / (FEAT_DIM ** 0.5)
    # stored as (F, N) = transpose of PyTorch weight (N, F)
    w_pose = jax.random.uniform(k1, (FEAT_DIM, POSE_DIM), jnp.float32, -bound, bound)
    b_pose = jax.random.uniform(k2, (POSE_DIM,), jnp.float32, -bound, bound)
    w_tran = jax.random.uniform(k3, (FEAT_DIM, TRAN_DIM), jnp.float32, -bound, bound)
    b_tran = jax.random.uniform(k4, (TRAN_DIM,), jnp.float32, -bound, bound)
    return w_pose, b_pose, w_tran, b_tran


if __name__ == "__main__":
    key = jax.random.PRNGKey(0)
    k_params, k_x = jax.random.split(key)

    # Small shapes consistent with the module: B=2, T=8, F=2048 (fixed by the Linear layers).
    B, T = 2, 8
    x = jax.random.normal(k_x, (B, T, FEAT_DIM), dtype=jnp.float32)
    w_pose, b_pose, w_tran, b_tran = init_params(k_params)

    # One-time param fusion (hoisted out of the forward path).
    w_fused_bf16, b_fused = fuse_params(w_pose, b_pose, w_tran, b_tran)
    w_fused_bf16, b_fused = jax.block_until_ready((w_fused_bf16, b_fused))

    delta_pose, delta_tran = regressor_forward(x, w_fused_bf16, b_fused)
    jax.block_until_ready((delta_pose, delta_tran))

    assert delta_pose.shape == (B, T, POSE_DIM)
    assert delta_tran.shape == (B, T, TRAN_DIM)

    # --- Reference checks ---------------------------------------------------
    x2d = x.reshape(B * T, FEAT_DIM)

    # bf16-operand reference (matches kernel arithmetic closely).
    xb = x2d.astype(jnp.bfloat16)
    ref_pose_bf = (jnp.dot(xb, w_pose.astype(jnp.bfloat16),
                           preferred_element_type=jnp.float32)
                   + b_pose).reshape(B, T, POSE_DIM)
    ref_tran_bf = (jnp.dot(xb, w_tran.astype(jnp.bfloat16),
                           preferred_element_type=jnp.float32)
                   + b_tran).reshape(B, T, TRAN_DIM)
    assert jnp.allclose(delta_pose, ref_pose_bf, atol=1e-2, rtol=1e-2)
    assert jnp.allclose(delta_tran, ref_tran_bf, atol=1e-2, rtol=1e-2)

    # f32 reference (module semantics) with tolerance for bf16 matmul operands.
    ref_pose = (x2d @ w_pose + b_pose).reshape(B, T, POSE_DIM)
    ref_tran = (x2d @ w_tran + b_tran).reshape(B, T, TRAN_DIM)
    assert jnp.allclose(delta_pose, ref_pose, atol=5e-2, rtol=5e-2)
    assert jnp.allclose(delta_tran, ref_tran, atol=5e-2, rtol=5e-2)

    print("KERNEL_OK")
</pallas_src>

<mosaic_0001>
module attributes {stable_mosaic.version = 11 : i64} {
  func.func @_regressor_kernel(%arg0: i32, %arg1: memref<16x2048xf32, #tpu.memory_space<vmem>>, %arg2: memref<2048x256xbf16, #tpu.memory_space<vmem>>, %arg3: memref<1x256xf32, #tpu.memory_space<vmem>>, %arg4: memref<16x256xf32, #tpu.memory_space<vmem>>) attributes {dimension_semantics = [#tpu.dimension_semantics<parallel>], iteration_bounds = array<i64: 1>, scalar_prefetch = 0 : i64, scratch_operands = 0 : i64, tpu.core_type = #tpu.core_type<tc>, window_params = [{transform_indices = @transform_0, window_bounds = array<i64: 16, 2048>}, {pipeline_mode = #tpu.pipeline_mode<synchronous>, transform_indices = @transform_1, window_bounds = array<i64: 2048, 256>}, {pipeline_mode = #tpu.pipeline_mode<synchronous>, transform_indices = @transform_2, window_bounds = array<i64: 1, 256>}, {transform_indices = @transform_3, window_bounds = array<i64: 16, 256>}]} {
    %c0 = arith.constant 0 : index
    %c0_0 = arith.constant 0 : index
    %0 = vector.load %arg1[%c0, %c0_0] : memref<16x2048xf32, #tpu.memory_space<vmem>>, vector<16x2048xf32>
    %1 = arith.truncf %0 : vector<16x2048xf32> to vector<16x2048xbf16>
    %c0_1 = arith.constant 0 : index
    %c0_2 = arith.constant 0 : index
    %2 = vector.load %arg2[%c0_1, %c0_2] : memref<2048x256xbf16, #tpu.memory_space<vmem>>, vector<2048x256xbf16>
    %cst = arith.constant dense<0.000000e+00> : vector<16x256xf32>
    %3 = tpu.matmul %1, %2, %cst {dimension_numbers = #tpu.dot_dimension_numbers<[1], [0], [0], [1], [0, 0, 1, 1], [], []>} : vector<16x2048xbf16>, vector<2048x256xbf16>, vector<16x256xf32> -> vector<16x256xf32>
    %c0_3 = arith.constant 0 : index
    %c0_4 = arith.constant 0 : index
    %4 = vector.load %arg3[%c0_3, %c0_4] : memref<1x256xf32, #tpu.memory_space<vmem>>, vector<1x256xf32>
    %5 = vector.broadcast %4 : vector<1x256xf32> to vector<16x256xf32>
    %6 = arith.addf %3, %5 : vector<16x256xf32>
    %c0_5 = arith.constant 0 : index
    %c0_6 = arith.constant 0 : index
    %7 = vector.load %arg4[%c0_5, %c0_6] : memref<16x256xf32, #tpu.memory_space<vmem>>, vector<16x256xf32>
    tpu.vector_store %arg4[%c0_5, %c0_6], %6 {strides = array<i32>} : memref<16x256xf32, #tpu.memory_space<vmem>>, vector<16x256xf32>,
    return
  }
  func.func @transform_0(%arg0: i32) -> (i32, i32) {
    %c0_i32 = arith.constant 0 : i32
    %c0_i32_0 = arith.constant 0 : i32
    return %arg0, %c0_i32 : i32, i32
  }
  func.func @transform_1(%arg0: i32) -> (i32, i32) {
    %c0_i32 = arith.constant 0 : i32
    %c0_i32_0 = arith.constant 0 : i32
    %c0_i32_1 = arith.constant 0 : i32
    return %c0_i32, %c0_i32_0 : i32, i32
  }
  func.func @transform_2(%arg0: i32) -> (i32, i32) {
    %c0_i32 = arith.constant 0 : i32
    %c0_i32_0 = arith.constant 0 : i32
    %c0_i32_1 = arith.constant 0 : i32
    return %c0_i32, %c0_i32_0 : i32, i32
  }
  func.func @transform_3(%arg0: i32) -> (i32, i32) {
    %c0_i32 = arith.constant 0 : i32
    %c0_i32_0 = arith.constant 0 : i32
    return %arg0, %c0_i32 : i32, i32
  }
}

</mosaic_0001>

<llo_original>
// kernel: regressor_forward.1
$region0: #{regressor_forward.1}
  #allocation0 [shape = 'u32[]', space=smem, size = 0x4, offset = 0x4, fixed_abs, tag = 'smem constant byte address 0x4 - core index']
  #allocation1 [shape = 'u32[144,128]{1,0:T(1,128)}', space=vmem, size = 0x12000, scoped, tag = 'internal scratch']
  %s0 = inlined_call_operand.hbm [shape: f32[16,2048], index: 0, kind: input, shape index: {}]
  %s1 = inlined_call_operand.hbm [shape: bf16[2048,256], index: 1, kind: input, shape index: {}]
  %s2 = inlined_call_operand.vmem [shape: f32[1,256], index: 2, kind: input, shape index: {}]
  %s3 = inlined_call_operand.vmem [shape: f32[16,256], index: 3, kind: output, shape index: {}]
  %s4 = sld [smem:[#allocation0]]
  $region30: #{regressor_forward.1} parent=0
    _
  %s6 = ssub.s32 1, %s4
  %s7 = scalar_select 0, %s6, %s4
  $region1: #{regressor_forward.1} parent=0
    #allocation2 [shape = 'u8[131072]{0}', space=vmem, size = 0x20000, scoped, tag = 'input window, operand 0, single buffered']
    #allocation3 [shape = 's32[1]{0}', space=sflag, size = 0x4, scoped, tag = 'scoped memory for regressor_forward.1']
    #allocation4 [shape = 'u8[1048576]{0}', space=vmem, size = 0x100000, scoped, tag = 'input window, operand 1, single buffered']
    #allocation5 [shape = 's32[1]{0}', space=sflag, size = 0x4, scoped, tag = 'scoped memory for regressor_forward.1']
    %8 = vsyncpa [#allocation3], 0
    %9 = vsyncpa [#allocation5], 0
    // Predicated region
    $region2: #{regressor_forward.1} parent=1 // pred_check
      _
    $region3: #{regressor_forward.1} parent=1 // pred_check_branch
      %11 = sbr.rel (0) target = $region5
    $region4: #{regressor_forward.1} parent=1 // pred_region
      %s13 = ssub.s32 4096, 4096
      %14 = vsyncadd [#allocation3], %s13
      %s15 = sshll.u32 [#allocation2], 4
      %s16 = int_to_ptr.vmem [resolvable:$true] %s15
      %21 = dma.hbm_to_vmem [thread:$0]  %s0, 4096, %s16, [#allocation3], 2048, 2048, 128
    $region5: #{regressor_forward.1} parent=1 // pred_fallthru
      _
    // Predicated region
    $region6: #{regressor_forward.1} parent=1 // pred_check
      _
    $region7: #{regressor_forward.1} parent=1 // pred_check_branch
      %23 = sbr.rel (0) target = $region9
    $region8: #{regressor_forward.1} parent=1 // pred_region
      %s25 = ssub.s32 32768, 32768
      %26 = vsyncadd [#allocation5], %s25
      %s27 = sshll.u32 [#allocation4], 4
      %s28 = int_to_ptr.vmem [resolvable:$true] %s27
      %33 = dma.hbm_to_vmem [thread:$0]  %s1, 32768, %s28, [#allocation5], 128, 128, 8
    $region9: #{regressor_forward.1} parent=1 // pred_fallthru
      _
    // Predicated region
    $region10: #{regressor_forward.1} parent=1 // pred_check
      _
    $region11: #{regressor_forward.1} parent=1 // pred_check_branch
      %35 = sbr.rel (0) target = $region13
    $region12: #{regressor_forward.1} parent=1 // pred_region
      _
    $region13: #{regressor_forward.1} parent=1 // pred_fallthru
      _
    // Predicated region
    $region14: #{regressor_forward.1} parent=1 // pred_check
      _
    $region15: #{regressor_forward.1} parent=1 // pred_check_branch
      %37 = sbr.rel (0) target = $region17
    $region16: #{regressor_forward.1} parent=1 // pred_region
      %38 = dma.done [#allocation3], 4096
    $region17: #{regressor_forward.1} parent=1 // pred_fallthru
      _
    // Predicated region
    $region18: #{regressor_forward.1} parent=1 // pred_check
      _
    $region19: #{regressor_forward.1} parent=1 // pred_check_branch
      %40 = sbr.rel (0) target = $region21
    $region20: #{regressor_forward.1} parent=1 // pred_region
      %41 = dma.done [#allocation5], 32768
    $region21: #{regressor_forward.1} parent=1 // pred_fallthru
      _
    %v42 = vld [vmem:[#allocation2] sm:$0xff]
    %v43 = vld [vmem:[#allocation2 + $0x8] sm:$0xff]
    %v44 = vld [vmem:[#allocation2 + $0x10] sm:$0xff]
    %v45 = vld [vmem:[#allocation2 + $0x18] sm:$0xff]
    %v46 = vld [vmem:[#allocation2 + $0x20] sm:$0xff]
    %v47 = vld [vmem:[#allocation2 + $0x28] sm:$0xff]
    %v48 = vld [vmem:[#allocation2 + $0x30] sm:$0xff]
    %v49 = vld [vmem:[#allocation2 + $0x38] sm:$0xff]
    %v50 = vld [vmem:[#allocation2 + $0x40] sm:$0xff]
    %v51 = vld [vmem:[#allocation2 + $0x48] sm:$0xff]
    %v52 = vld [vmem:[#allocation2 + $0x50] sm:$0xff]
    %v53 = vld [vmem:[#allocation2 + $0x58] sm:$0xff]
    %v54 = vld [vmem:[#allocation2 + $0x60] sm:$0xff]
    %v55 = vld [vmem:[#allocation2 + $0x68] sm:$0xff]
    %v56 = vld [vmem:[#allocation2 + $0x70] sm:$0xff]
    %v57 = vld [vmem:[#allocation2 + $0x78] sm:$0xff]
    %v58 = vld [vmem:[#allocation2 + $0x80] sm:$0xff]
    %v59 = vld [vmem:[#allocation2 + $0x88] sm:$0xff]
    %v60 = vld [vmem:[#allocation2 + $0x90] sm:$0xff]
    %v61 = vld [vmem:[#allocation2 + $0x98] sm:$0xff]
    %v62 = vld [vmem:[#allocation2 + $0xa0] sm:$0xff]
    %v63 = vld [vmem:[#allocation2 + $0xa8] sm:$0xff]
    %v64 = vld [vmem:[#allocation2 + $0xb0] sm:$0xff]
    %v65 = vld [vmem:[#allocation2 + $0xb8] sm:$0xff]
    %v66 = vld [vmem:[#allocation2 + $0xc0] sm:$0xff]
    %v67 = vld [vmem:[#allocation2 + $0xc8] sm:$0xff]
    %v68 = vld [vmem:[#allocation2 + $0xd0] sm:$0xff]
    %v69 = vld [vmem:[#allocation2 + $0xd8] sm:$0xff]
    %v70 = vld [vmem:[#allocation2 + $0xe0] sm:$0xff]
    %v71 = vld [vmem:[#allocation2 + $0xe8] sm:$0xff]
    %v72 = vld [vmem:[#allocation2 + $0xf0] sm:$0xff]
    %v73 = vld [vmem:[#allocation2 + $0xf8] sm:$0xff]
    %v74 = vpack.c.bf16 %v58, %v42
    %v75 = vpack.c.bf16 %v59, %v43
    %v76 = vpack.c.bf16 %v60, %v44
    %v77 = vpack.c.bf16 %v61, %v45
    %v78 = vpack.c.bf16 %v62, %v46
    %v79 = vpack.c.bf16 %v63, %v47
    %v80 = vpack.c.bf16 %v64, %v48
    %v81 = vpack.c.bf16 %v65, %v49
    %v82 = vpack.c.bf16 %v66, %v50
    %v83 = vpack.c.bf16 %v67, %v51
    %v84 = vpack.c.bf16 %v68, %v52
    %v85 = vpack.c.bf16 %v69, %v53
    %v86 = vpack.c.bf16 %v70, %v54
    %v87 = vpack.c.bf16 %v71, %v55
    %v88 = vpack.c.bf16 %v72, %v56
    %v89 = vpack.c.bf16 %v73, %v57
    %v90 = vld [vmem:[#allocation4] sm:$0xff]
    %v91 = vld [vmem:[#allocation4 + $0x8] sm:$0xff]
    %v92 = vld [vmem:[#allocation4 + $0x10] sm:$0xff]
    %v93 = vld [vmem:[#allocation4 + $0x18] sm:$0xff]
    %v94 = vld [vmem:[#allocation4 + $0x20] sm:$0xff]
    %v95 = vld [vmem:[#allocation4 + $0x28] sm:$0xff]
    %v96 = vld [vmem:[#allocation4 + $0x30] sm:$0xff]
    %v97 = vld [vmem:[#allocation4 + $0x38] sm:$0xff]
    %v98 = vld [vmem:[#allocation4 + $0x40] sm:$0xff]
    %v99 = vld [vmem:[#allocation4 + $0x48] sm:$0xff]
    %v100 = vld [vmem:[#allocation4 + $0x50] sm:$0xff]
    %v101 = vld [vmem:[#allocation4 + $0x58] sm:$0xff]
    %v102 = vld [vmem:[#allocation4 + $0x60] sm:$0xff]
    %v103 = vld [vmem:[#allocation4 + $0x68] sm:$0xff]
    %v104 = vld [vmem:[#allocation4 + $0x70] sm:$0xff]
    %v105 = vld [vmem:[#allocation4 + $0x78] sm:$0xff]
    %v106 = vld [vmem:[#allocation4 + $0x80] sm:$0xff]
    %v107 = vld [vmem:[#allocation4 + $0x88] sm:$0xff]
    %v108 = vld [vmem:[#allocation4 + $0x90] sm:$0xff]
    %v109 = vld [vmem:[#allocation4 + $0x98] sm:$0xff]
    %v110 = vld [vmem:[#allocation4 + $0xa0] sm:$0xff]
    %v111 = vld [vmem:[#allocation4 + $0xa8] sm:$0xff]
    %v112 = vld [vmem:[#allocation4 + $0xb0] sm:$0xff]
    %v113 = vld [vmem:[#allocation4 + $0xb8] sm:$0xff]
    %v114 = vld [vmem:[#allocation4 + $0xc0] sm:$0xff]
    %v115 = vld [vmem:[#allocation4 + $0xc8] sm:$0xff]
    %v116 = vld [vmem:[#allocation4 + $0xd0] sm:$0xff]
    %v117 = vld [vmem:[#allocation4 + $0xd8] sm:$0xff]
    %v118 = vld [vmem:[#allocation4 + $0xe0] sm:$0xff]
    %v119 = vld [vmem:[#allocation4 + $0xe8] sm:$0xff]
    %v120 = vld [vmem:[#allocation4 + $0xf0] sm:$0xff]
    %v121 = vld [vmem:[#allocation4 + $0xf8] sm:$0xff]
    %v122 = vld [vmem:[#allocation4 + $0x100] sm:$0xff]
    %v123 = vld [vmem:[#allocation4 + $0x108] sm:$0xff]
    %v124 = vld [vmem:[#allocation4 + $0x110] sm:$0xff]
    %v125 = vld [vmem:[#allocation4 + $0x118] sm:$0xff]
    %v126 = vld [vmem:[#allocation4 + $0x120] sm:$0xff]
    %v127 = vld [vmem:[#allocation4 + $0x128] sm:$0xff]
    %v128 = vld [vmem:[#allocation4 + $0x130] sm:$0xff]
    %v129 = vld [vmem:[#allocation4 + $0x138] sm:$0xff]
    %v130 = vld [vmem:[#allocation4 + $0x140] sm:$0xff]
    %v131 = vld [vmem:[#allocation4 + $0x148] sm:$0xff]
    %v132 = vld [vmem:[#allocation4 + $0x150] sm:$0xff]
    %v133 = vld [vmem:[#allocation4 + $0x158] sm:$0xff]
    %v134 = vld [vmem:[#allocation4 + $0x160] sm:$0xff]
    %v135 = vld [vmem:[#allocation4 + $0x168] sm:$0xff]
    %v136 = vld [vmem:[#allocation4 + $0x170] sm:$0xff]
    %v137 = vld [vmem:[#allocation4 + $0x178] sm:$0xff]
    %v138 = vld [vmem:[#allocation4 + $0x180] sm:$0xff]
    %v139 = vld [vmem:[#allocation4 + $0x188] sm:$0xff]
    %v140 = vld [vmem:[#allocation4 + $0x190] sm:$0xff]
    %v141 = vld [vmem:[#allocation4 + $0x198] sm:$0xff]
    %v142 = vld [vmem:[#allocation4 + $0x1a0] sm:$0xff]
    %v143 = vld [vmem:[#allocation4 + $0x1a8] sm:$0xff]
    %v144 = vld [vmem:[#allocation4 + $0x1b0] sm:$0xff]
    %v145 = vld [vmem:[#allocation4 + $0x1b8] sm:$0xff]
    %v146 = vld [vmem:[#allocation4 + $0x1c0] sm:$0xff]
    %v147 = vld [vmem:[#allocation4 + $0x1c8] sm:$0xff]
    %v148 = vld [vmem:[#allocation4 + $0x1d0] sm:$0xff]
    %v149 = vld [vmem:[#allocation4 + $0x1d8] sm:$0xff]
    %v150 = vld [vmem:[#allocation4 + $0x1e0] sm:$0xff]
    %v151 = vld [vmem:[#allocation4 + $0x1e8] sm:$0xff]
    %v152 = vld [vmem:[#allocation4 + $0x1f0] sm:$0xff]
    %v153 = vld [vmem:[#allocation4 + $0x1f8] sm:$0xff]
    %v154 = vld [vmem:[#allocation4 + $0x200] sm:$0xff]
    %v155 = vld [vmem:[#allocation4 + $0x208] sm:$0xff]
    %v156 = vld [vmem:[#allocation4 + $0x210] sm:$0xff]
    %v157 = vld [vmem:[#allocation4 + $0x218] sm:$0xff]
    %v158 = vld [vmem:[#allocation4 + $0x220] sm:$0xff]
    %v159 = vld [vmem:[#allocation4 + $0x228] sm:$0xff]
    %v160 = vld [vmem:[#allocation4 + $0x230] sm:$0xff]
    %v161 = vld [vmem:[#allocation4 + $0x238] sm:$0xff]
    %v162 = vld [vmem:[#allocation4 + $0x240] sm:$0xff]
    %v163 = vld [vmem:[#allocation4 + $0x248] sm:$0xff]
    %v164 = vld [vmem:[#allocation4 + $0x250] sm:$0xff]
    %v165 = vld [vmem:[#allocation4 + $0x258] sm:$0xff]
    %v166 = vld [vmem:[#allocation4 + $0x260] sm:$0xff]
    %v167 = vld [vmem:[#allocation4 + $0x268] sm:$0xff]
    %v168 = vld [vmem:[#allocation4 + $0x270] sm:$0xff]
    %v169 = vld [vmem:[#allocation4 + $0x278] sm:$0xff]
    %v170 = vld [vmem:[#allocation4 + $0x280] sm:$0xff]
    %v171 = vld [vmem:[#allocation4 + $0x288] sm:$0xff]
    %v172 = vld [vmem:[#allocation4 + $0x290] sm:$0xff]
    %v173 = vld [vmem:[#allocation4 + $0x298] sm:$0xff]
    %v174 = vld [vmem:[#allocation4 + $0x2a0] sm:$0xff]
    %v175 = vld [vmem:[#allocation4 + $0x2a8] sm:$0xff]
    %v176 = vld [vmem:[#allocation4 + $0x2b0] sm:$0xff]
    %v177 = vld [vmem:[#allocation4 + $0x2b8] sm:$0xff]
    %v178 = vld [vmem:[#allocation4 + $0x2c0] sm:$0xff]
    %v179 = vld [vmem:[#allocation4 + $0x2c8] sm:$0xff]
    %v180 = vld [vmem:[#allocation4 + $0x2d0] sm:$0xff]
    %v181 = vld [vmem:[#allocation4 + $0x2d8] sm:$0xff]
    %v182 = vld [vmem:[#allocation4 + $0x2e0] sm:$0xff]
    %v183 = vld [vmem:[#allocation4 + $0x2e8] sm:$0xff]
    %v184 = vld [vmem:[#allocation4 + $0x2f0] sm:$0xff]
    %v185 = vld [vmem:[#allocation4 + $0x2f8] sm:$0xff]
    %v186 = vld [vmem:[#allocation4 + $0x300] sm:$0xff]
    %v187 = vld [vmem:[#allocation4 + $0x308] sm:$0xff]
    %v188 = vld [vmem:[#allocation4 + $0x310] sm:$0xff]
    %v189 = vld [vmem:[#allocation4 + $0x318] sm:$0xff]
    %v190 = vld [vmem:[#allocation4 + $0x320] sm:$0xff]
    %v191 = vld [vmem:[#allocation4 + $0x328] sm:$0xff]
    %v192 = vld [vmem:[#allocation4 + $0x330] sm:$0xff]
    %v193 = vld [vmem:[#allocation4 + $0x338] sm:$0xff]
    %v194 = vld [vmem:[#allocation4 + $0x340] sm:$0xff]
    %v195 = vld [vmem:[#allocation4 + $0x348] sm:$0xff]
    %v196 = vld [vmem:[#allocation4 + $0x350] sm:$0xff]
    %v197 = vld [vmem:[#allocation4 + $0x358] sm:$0xff]
    %v198 = vld [vmem:[#allocation4 + $0x360] sm:$0xff]
    %v199 = vld [vmem:[#allocation4 + $0x368] sm:$0xff]
    %v200 = vld [vmem:[#allocation4 + $0x370] sm:$0xff]
    %v201 = vld [vmem:[#allocation4 + $0x378] sm:$0xff]
    %v202 = vld [vmem:[#allocation4 + $0x380] sm:$0xff]
    %v203 = vld [vmem:[#allocation4 + $0x388] sm:$0xff]
    %v204 = vld [vmem:[#allocation4 + $0x390] sm:$0xff]
    %v205 = vld [vmem:[#allocation4 + $0x398] sm:$0xff]
    %v206 = vld [vmem:[#allocation4 + $0x3a0] sm:$0xff]
    %v207 = vld [vmem:[#allocation4 + $0x3a8] sm:$0xff]
    %v208 = vld [vmem:[#allocation4 + $0x3b0] sm:$0xff]
    %v209 = vld [vmem:[#allocation4 + $0x3b8] sm:$0xff]
    %v210 = vld [vmem:[#allocation4 + $0x3c0] sm:$0xff]
    %v211 = vld [vmem:[#allocation4 + $0x3c8] sm:$0xff]
    %v212 = vld [vmem:[#allocation4 + $0x3d0] sm:$0xff]
    %v213 = vld [vmem:[#allocation4 + $0x3d8] sm:$0xff]
    %v214 = vld [vmem:[#allocation4 + $0x3e0] sm:$0xff]
    %v215 = vld [vmem:[#allocation4 + $0x3e8] sm:$0xff]
    %v216 = vld [vmem:[#allocation4 + $0x3f0] sm:$0xff]
    %v217 = vld [vmem:[#allocation4 + $0x3f8] sm:$0xff]
    %v218 = vld [vmem:[#allocation4 + $0x400] sm:$0xff]
    %v219 = vld [vmem:[#allocation4 + $0x408] sm:$0xff]
    %v220 = vld [vmem:[#allocation4 + $0x410] sm:$0xff]
    %v221 = vld [vmem:[#allocation4 + $0x418] sm:$0xff]
    %v222 = vld [vmem:[#allocation4 + $0x420] sm:$0xff]
    %v223 = vld [vmem:[#allocation4 + $0x428] sm:$0xff]
    %v224 = vld [vmem:[#allocation4 + $0x430] sm:$0xff]
    %v225 = vld [vmem:[#allocation4 + $0x438] sm:$0xff]
    %v226 = vld [vmem:[#allocation4 + $0x440] sm:$0xff]
    %v227 = vld [vmem:[#allocation4 + $0x448] sm:$0xff]
    %v228 = vld [vmem:[#allocation4 + $0x450] sm:$0xff]
    %v229 = vld [vmem:[#allocation4 + $0x458] sm:$0xff]
    %v230 = vld [vmem:[#allocation4 + $0x460] sm:$0xff]
    %v231 = vld [vmem:[#allocation4 + $0x468] sm:$0xff]
    %v232 = vld [vmem:[#allocation4 + $0x470] sm:$0xff]
    %v233 = vld [vmem:[#allocation4 + $0x478] sm:$0xff]
    %v234 = vld [vmem:[#allocation4 + $0x480] sm:$0xff]
    %v235 = vld [vmem:[#allocation4 + $0x488] sm:$0xff]
    %v236 = vld [vmem:[#allocation4 + $0x490] sm:$0xff]
    %v237 = vld [vmem:[#allocation4 + $0x498] sm:$0xff]
    %v238 = vld [vmem:[#allocation4 + $0x4a0] sm:$0xff]
    %v239 = vld [vmem:[#allocation4 + $0x4a8] sm:$0xff]
    %v240 = vld [vmem:[#allocation4 + $0x4b0] sm:$0xff]
    %v241 = vld [vmem:[#allocation4 + $0x4b8] sm:$0xff]
    %v242 = vld [vmem:[#allocation4 + $0x4c0] sm:$0xff]
    %v243 = vld [vmem:[#allocation4 + $0x4c8] sm:$0xff]
    %v244 = vld [vmem:[#allocation4 + $0x4d0] sm:$0xff]
    %v245 = vld [vmem:[#allocation4 + $0x4d8] sm:$0xff]
    %v246 = vld [vmem:[#allocation4 + $0x4e0] sm:$0xff]
    %v247 = vld [vmem:[#allocation4 + $0x4e8] sm:$0xff]
    %v248 = vld [vmem:[#allocation4 + $0x4f0] sm:$0xff]
    %v249 = vld [vmem:[#allocation4 + $0x4f8] sm:$0xff]
    %v250 = vld [vmem:[#allocation4 + $0x500] sm:$0xff]
    %v251 = vld [vmem:[#allocation4 + $0x508] sm:$0xff]
    %v252 = vld [vmem:[#allocation4 + $0x510] sm:$0xff]
    %v253 = vld [vmem:[#allocation4 + $0x518] sm:$0xff]
    %v254 = vld [vmem:[#allocation4 + $0x520] sm:$0xff]
    %v255 = vld [vmem:[#allocation4 + $0x528] sm:$0xff]
    %v256 = vld [vmem:[#allocation4 + $0x530] sm:$0xff]
    %v257 = vld [vmem:[#allocation4 + $0x538] sm:$0xff]
    %v258 = vld [vmem:[#allocation4 + $0x540] sm:$0xff]
    %v259 = vld [vmem:[#allocation4 + $0x548] sm:$0xff]
    %v260 = vld [vmem:[#allocation4 + $0x550] sm:$0xff]
    %v261 = vld [vmem:[#allocation4 + $0x558] sm:$0xff]
    %v262 = vld [vmem:[#allocation4 + $0x560] sm:$0xff]
    %v263 = vld [vmem:[#allocation4 + $0x568] sm:$0xff]
    %v264 = vld [vmem:[#allocation4 + $0x570] sm:$0xff]
    %v265 = vld [vmem:[#allocation4 + $0x578] sm:$0xff]
    %v266 = vld [vmem:[#allocation4 + $0x580] sm:$0xff]
    %v267 = vld [vmem:[#allocation4 + $0x588] sm:$0xff]
    %v268 = vld [vmem:[#allocation4 + $0x590] sm:$0xff]
    %v269 = vld [vmem:[#allocation4 + $0x598] sm:$0xff]
    %v270 = vld [vmem:[#allocation4 + $0x5a0] sm:$0xff]
    %v271 = vld [vmem:[#allocation4 + $0x5a8] sm:$0xff]
    %v272 = vld [vmem:[#allocation4 + $0x5b0] sm:$0xff]
    %v273 = vld [vmem:[#allocation4 + $0x5b8] sm:$0xff]
    %v274 = vld [vmem:[#allocation4 + $0x5c0] sm:$0xff]
    %v275 = vld [vmem:[#allocation4 + $0x5c8] sm:$0xff]
    %v276 = vld [vmem:[#allocation4 + $0x5d0] sm:$0xff]
    %v277 = vld [vmem:[#allocation4 + $0x5d8] sm:$0xff]
    %v278 = vld [vmem:[#allocation4 + $0x5e0] sm:$0xff]
    %v279 = vld [vmem:[#allocation4 + $0x5e8] sm:$0xff]
    %v280 = vld [vmem:[#allocation4 + $0x5f0] sm:$0xff]
    %v281 = vld [vmem:[#allocation4 + $0x5f8] sm:$0xff]
    %v282 = vld [vmem:[#allocation4 + $0x600] sm:$0xff]
    %v283 = vld [vmem:[#allocation4 + $0x608] sm:$0xff]
    %v284 = vld [vmem:[#allocation4 + $0x610] sm:$0xff]
    %v285 = vld [vmem:[#allocation4 + $0x618] sm:$0xff]
    %v286 = vld [vmem:[#allocation4 + $0x620] sm:$0xff]
    %v287 = vld [vmem:[#allocation4 + $0x628] sm:$0xff]
    %v288 = vld [vmem:[#allocation4 + $0x630] sm:$0xff]
    %v289 = vld [vmem:[#allocation4 + $0x638] sm:$0xff]
    %v290 = vld [vmem:[#allocation4 + $0x640] sm:$0xff]
    %v291 = vld [vmem:[#allocation4 + $0x648] sm:$0xff]
    %v292 = vld [vmem:[#allocation4 + $0x650] sm:$0xff]
    %v293 = vld [vmem:[#allocation4 + $0x658] sm:$0xff]
    %v294 = vld [vmem:[#allocation4 + $0x660] sm:$0xff]
    %v295 = vld [vmem:[#allocation4 + $0x668] sm:$0xff]
    %v296 = vld [vmem:[#allocation4 + $0x670] sm:$0xff]
    %v297 = vld [vmem:[#allocation4 + $0x678] sm:$0xff]
    %v298 = vld [vmem:[#allocation4 + $0x680] sm:$0xff]
    %v299 = vld [vmem:[#allocation4 + $0x688] sm:$0xff]
    %v300 = vld [vmem:[#allocation4 + $0x690] sm:$0xff]
    %v301 = vld [vmem:[#allocation4 + $0x698] sm:$0xff]
    %v302 = vld [vmem:[#allocation4 + $0x6a0] sm:$0xff]
    %v303 = vld [vmem:[#allocation4 + $0x6a8] sm:$0xff]
    %v304 = vld [vmem:[#allocation4 + $0x6b0] sm:$0xff]
    %v305 = vld [vmem:[#allocation4 + $0x6b8] sm:$0xff]
    %v306 = vld [vmem:[#allocation4 + $0x6c0] sm:$0xff]
    %v307 = vld [vmem:[#allocation4 + $0x6c8] sm:$0xff]
    %v308 = vld [vmem:[#allocation4 + $0x6d0] sm:$0xff]
    %v309 = vld [vmem:[#allocation4 + $0x6d8] sm:$0xff]
    %v310 = vld [vmem:[#allocation4 + $0x6e0] sm:$0xff]
    %v311 = vld [vmem:[#allocation4 + $0x6e8] sm:$0xff]
    %v312 = vld [vmem:[#allocation4 + $0x6f0] sm:$0xff]
    %v313 = vld [vmem:[#allocation4 + $0x6f8] sm:$0xff]
    %v314 = vld [vmem:[#allocation4 + $0x700] sm:$0xff]
    %v315 = vld [vmem:[#allocation4 + $0x708] sm:$0xff]
    %v316 = vld [vmem:[#allocation4 + $0x710] sm:$0xff]
    %v317 = vld [vmem:[#allocation4 + $0x718] sm:$0xff]
    %v318 = vld [vmem:[#allocation4 + $0x720] sm:$0xff]
    %v319 = vld [vmem:[#allocation4 + $0x728] sm:$0xff]
    %v320 = vld [vmem:[#allocation4 + $0x730] sm:$0xff]
    %v321 = vld [vmem:[#allocation4 + $0x738] sm:$0xff]
    %v322 = vld [vmem:[#allocation4 + $0x740] sm:$0xff]
    %v323 = vld [vmem:[#allocation4 + $0x748] sm:$0xff]
    %v324 = vld [vmem:[#allocation4 + $0x750] sm:$0xff]
    %v325 = vld [vmem:[#allocation4 + $0x758] sm:$0xff]
    %v326 = vld [vmem:[#allocation4 + $0x760] sm:$0xff]
    %v327 = vld [vmem:[#allocation4 + $0x768] sm:$0xff]
    %v328 = vld [vmem:[#allocation4 + $0x770] sm:$0xff]
    %v329 = vld [vmem:[#allocation4 + $0x778] sm:$0xff]
    %v330 = vld [vmem:[#allocation4 + $0x780] sm:$0xff]
    %v331 = vld [vmem:[#allocation4 + $0x788] sm:$0xff]
    %v332 = vld [vmem:[#allocation4 + $0x790] sm:$0xff]
    %v333 = vld [vmem:[#allocation4 + $0x798] sm:$0xff]
    %v334 = vld [vmem:[#allocation4 + $0x7a0] sm:$0xff]
    %v335 = vld [vmem:[#allocation4 + $0x7a8] sm:$0xff]
    %v336 = vld [vmem:[#allocation4 + $0x7b0] sm:$0xff]
    %v337 = vld [vmem:[#allocation4 + $0x7b8] sm:$0xff]
    %v338 = vld [vmem:[#allocation4 + $0x7c0] sm:$0xff]
    %v339 = vld [vmem:[#allocation4 + $0x7c8] sm:$0xff]
    %v340 = vld [vmem:[#allocation4 + $0x7d0] sm:$0xff]
    %v341 = vld [vmem:[#allocation4 + $0x7d8] sm:$0xff]
    %v342 = vld [vmem:[#allocation4 + $0x7e0] sm:$0xff]
    %v343 = vld [vmem:[#allocation4 + $0x7e8] sm:$0xff]
    %v344 = vld [vmem:[#allocation4 + $0x7f0] sm:$0xff]
    %v345 = vld [vmem:[#allocation4 + $0x7f8] sm:$0xff]
    %v346 = vld [vmem:[%s2] sm:$0x3]
    %v348 = vlaneseq
    %v349 = vshrl.u32 %v348, 7
    %v350 = vsub.s32 0, %v349
    %v351 = vrot.slane %v346, %v350
    %v352 = vlaneseq
    %v353 = vshrl.u32 %v352, 7
    %v354 = vsub.s32 1, %v353
    %v355 = vrot.slane %v346, %v354
    %v614 = vunpack.c.l.b16 %v90
    %v615 = vunpack.c.h.b16 %v90
    %v616 = vunpack.c.l.b16 %v91
    %v617 = vunpack.c.h.b16 %v91
    %v618 = vunpack.c.l.b16 %v92
    %v619 = vunpack.c.h.b16 %v92
    %v620 = vunpack.c.l.b16 %v93
    %v621 = vunpack.c.h.b16 %v93
    %v622 = vunpack.c.l.b16 %v94
    %v623 = vunpack.c.h.b16 %v94
    %v624 = vunpack.c.l.b16 %v95
    %v625 = vunpack.c.h.b16 %v95
    %v626 = vunpack.c.l.b16 %v96
    %v627 = vunpack.c.h.b16 %v96
    %v628 = vunpack.c.l.b16 %v97
    %v629 = vunpack.c.h.b16 %v97
    %v630 = vunpack.c.l.b16 %v98
    %v631 = vunpack.c.h.b16 %v98
    %v632 = vunpack.c.l.b16 %v99
    %v633 = vunpack.c.h.b16 %v99
    %v634 = vunpack.c.l.b16 %v100
    %v635 = vunpack.c.h.b16 %v100
    %v636 = vunpack.c.l.b16 %v101
    %v637 = vunpack.c.h.b16 %v101
    %v638 = vunpack.c.l.b16 %v102
    %v639 = vunpack.c.h.b16 %v102
    %v640 = vunpack.c.l.b16 %v103
    %v641 = vunpack.c.h.b16 %v103
    %v642 = vunpack.c.l.b16 %v104
    %v643 = vunpack.c.h.b16 %v104
    %v644 = vunpack.c.l.b16 %v105
    %v645 = vunpack.c.h.b16 %v105
    %v646 = vunpack.c.l.b16 %v106
    %v647 = vunpack.c.h.b16 %v106
    %v648 = vunpack.c.l.b16 %v107
    %v649 = vunpack.c.h.b16 %v107
    %v650 = vunpack.c.l.b16 %v108
    %v651 = vunpack.c.h.b16 %v108
    %v652 = vunpack.c.l.b16 %v109
    %v653 = vunpack.c.h.b16 %v109
    %v654 = vunpack.c.l.b16 %v110
    %v655 = vunpack.c.h.b16 %v110
    %v656 = vunpack.c.l.b16 %v111
    %v657 = vunpack.c.h.b16 %v111
    %v658 = vunpack.c.l.b16 %v112
    %v659 = vunpack.c.h.b16 %v112
    %v660 = vunpack.c.l.b16 %v113
    %v661 = vunpack.c.h.b16 %v113
    %v662 = vunpack.c.l.b16 %v114
    %v663 = vunpack.c.h.b16 %v114
    %v664 = vunpack.c.l.b16 %v115
    %v665 = vunpack.c.h.b16 %v115
    %v666 = vunpack.c.l.b16 %v116
    %v667 = vunpack.c.h.b16 %v116
    %v668 = vunpack.c.l.b16 %v117
    %v669 = vunpack.c.h.b16 %v117
    %v670 = vunpack.c.l.b16 %v118
    %v671 = vunpack.c.h.b16 %v118
    %v672 = vunpack.c.l.b16 %v119
    %v673 = vunpack.c.h.b16 %v119
    %v674 = vunpack.c.l.b16 %v120
    %v675 = vunpack.c.h.b16 %v120
    %v676 = vunpack.c.l.b16 %v121
    %v677 = vunpack.c.h.b16 %v121
    %v678 = vunpack.c.l.b16 %v122
    %v679 = vunpack.c.h.b16 %v122
    %v680 = vunpack.c.l.b16 %v123
    %v681 = vunpack.c.h.b16 %v123
    %v682 = vunpack.c.l.b16 %v124
    %v683 = vunpack.c.h.b16 %v124
    %v684 = vunpack.c.l.b16 %v125
    %v685 = vunpack.c.h.b16 %v125
    %v686 = vunpack.c.l.b16 %v126
    %v687 = vunpack.c.h.b16 %v126
    %v688 = vunpack.c.l.b16 %v127
    %v689 = vunpack.c.h.b16 %v127
    %v690 = vunpack.c.l.b16 %v128
    %v691 = vunpack.c.h.b16 %v128
    %v692 = vunpack.c.l.b16 %v129
    %v693 = vunpack.c.h.b16 %v129
    %v694 = vunpack.c.l.b16 %v130
    %v695 = vunpack.c.h.b16 %v130
    %v696 = vunpack.c.l.b16 %v131
    %v697 = vunpack.c.h.b16 %v131
    %v698 = vunpack.c.l.b16 %v132
    %v699 = vunpack.c.h.b16 %v132
    %v700 = vunpack.c.l.b16 %v133
    %v701 = vunpack.c.h.b16 %v133
    %v702 = vunpack.c.l.b16 %v134
    %v703 = vunpack.c.h.b16 %v134
    %v704 = vunpack.c.l.b16 %v135
    %v705 = vunpack.c.h.b16 %v135
    %v706 = vunpack.c.l.b16 %v136
    %v707 = vunpack.c.h.b16 %v136
    %v708 = vunpack.c.l.b16 %v137
    %v709 = vunpack.c.h.b16 %v137
    %v710 = vunpack.c.l.b16 %v138
    %v711 = vunpack.c.h.b16 %v138
    %v712 = vunpack.c.l.b16 %v139
    %v713 = vunpack.c.h.b16 %v139
    %v714 = vunpack.c.l.b16 %v140
    %v715 = vunpack.c.h.b16 %v140
    %v716 = vunpack.c.l.b16 %v141
    %v717 = vunpack.c.h.b16 %v141
    %v718 = vunpack.c.l.b16 %v142
    %v719 = vunpack.c.h.b16 %v142
    %v720 = vunpack.c.l.b16 %v143
    %v721 = vunpack.c.h.b16 %v143
    %v722 = vunpack.c.l.b16 %v144
    %v723 = vunpack.c.h.b16 %v144
    %v724 = vunpack.c.l.b16 %v145
    %v725 = vunpack.c.h.b16 %v145
    %v726 = vunpack.c.l.b16 %v146
    %v727 = vunpack.c.h.b16 %v146
    %v728 = vunpack.c.l.b16 %v147
    %v729 = vunpack.c.h.b16 %v147
    %v730 = vunpack.c.l.b16 %v148
    %v731 = vunpack.c.h.b16 %v148
    %v732 = vunpack.c.l.b16 %v149
    %v733 = vunpack.c.h.b16 %v149
    %v734 = vunpack.c.l.b16 %v150
    %v735 = vunpack.c.h.b16 %v150
    %v736 = vunpack.c.l.b16 %v151
    %v737 = vunpack.c.h.b16 %v151
    %v738 = vunpack.c.l.b16 %v152
    %v739 = vunpack.c.h.b16 %v152
    %v740 = vunpack.c.l.b16 %v153
    %v741 = vunpack.c.h.b16 %v153
    %v742 = vunpack.c.l.b16 %v154
    %v743 = vunpack.c.h.b16 %v154
    %v744 = vunpack.c.l.b16 %v155
    %v745 = vunpack.c.h.b16 %v155
    %v746 = vunpack.c.l.b16 %v156
    %v747 = vunpack.c.h.b16 %v156
    %v748 = vunpack.c.l.b16 %v157
    %v749 = vunpack.c.h.b16 %v157
    %v750 = vunpack.c.l.b16 %v158
    %v751 = vunpack.c.h.b16 %v158
    %v752 = vunpack.c.l.b16 %v159
    %v753 = vunpack.c.h.b16 %v159
    %v754 = vunpack.c.l.b16 %v160
    %v755 = vunpack.c.h.b16 %v160
    %v756 = vunpack.c.l.b16 %v161
    %v757 = vunpack.c.h.b16 %v161
    %v758 = vunpack.c.l.b16 %v162
    %v759 = vunpack.c.h.b16 %v162
    %v760 = vunpack.c.l.b16 %v163
    %v761 = vunpack.c.h.b16 %v163
    %v762 = vunpack.c.l.b16 %v164
    %v763 = vunpack.c.h.b16 %v164
    %v764 = vunpack.c.l.b16 %v165
    %v765 = vunpack.c.h.b16 %v165
    %v766 = vunpack.c.l.b16 %v166
    %v767 = vunpack.c.h.b16 %v166
    %v768 = vunpack.c.l.b16 %v167
    %v769 = vunpack.c.h.b16 %v167
    %v770 = vunpack.c.l.b16 %v168
    %v771 = vunpack.c.h.b16 %v168
    %v772 = vunpack.c.l.b16 %v169
    %v773 = vunpack.c.h.b16 %v169
    %v774 = vunpack.c.l.b16 %v170
    %v775 = vunpack.c.h.b16 %v170
    %v776 = vunpack.c.l.b16 %v171
    %v777 = vunpack.c.h.b16 %v171
    %v778 = vunpack.c.l.b16 %v172
    %v779 = vunpack.c.h.b16 %v172
    %v780 = vunpack.c.l.b16 %v173
    %v781 = vunpack.c.h.b16 %v173
    %v782 = vunpack.c.l.b16 %v174
    %v783 = vunpack.c.h.b16 %v174
    %v784 = vunpack.c.l.b16 %v175
    %v785 = vunpack.c.h.b16 %v175
    %v786 = vunpack.c.l.b16 %v176
    %v787 = vunpack.c.h.b16 %v176
    %v788 = vunpack.c.l.b16 %v177
    %v789 = vunpack.c.h.b16 %v177
    %v790 = vunpack.c.l.b16 %v178
    %v791 = vunpack.c.h.b16 %v178
    %v792 = vunpack.c.l.b16 %v179
    %v793 = vunpack.c.h.b16 %v179
    %v794 = vunpack.c.l.b16 %v180
    %v795 = vunpack.c.h.b16 %v180
    %v796 = vunpack.c.l.b16 %v181
    %v797 = vunpack.c.h.b16 %v181
    %v798 = vunpack.c.l.b16 %v182
    %v799 = vunpack.c.h.b16 %v182
    %v800 = vunpack.c.l.b16 %v183
    %v801 = vunpack.c.h.b16 %v183
    %v802 = vunpack.c.l.b16 %v184
    %v803 = vunpack.c.h.b16 %v184
    %v804 = vunpack.c.l.b16 %v185
    %v805 = vunpack.c.h.b16 %v185
    %v806 = vunpack.c.l.b16 %v186
    %v807 = vunpack.c.h.b16 %v186
    %v808 = vunpack.c.l.b16 %v187
    %v809 = vunpack.c.h.b16 %v187
    %v810 = vunpack.c.l.b16 %v188
    %v811 = vunpack.c.h.b16 %v188
    %v812 = vunpack.c.l.b16 %v189
    %v813 = vunpack.c.h.b16 %v189
    %v814 = vunpack.c.l.b16 %v190
    %v815 = vunpack.c.h.b16 %v190
    %v816 = vunpack.c.l.b16 %v191
    %v817 = vunpack.c.h.b16 %v191
    %v818 = vunpack.c.l.b16 %v192
    %v819 = vunpack.c.h.b16 %v192
    %v820 = vunpack.c.l.b16 %v193
    %v821 = vunpack.c.h.b16 %v193
    %v822 = vunpack.c.l.b16 %v194
    %v823 = vunpack.c.h.b16 %v194
    %v824 = vunpack.c.l.b16 %v195
    %v825 = vunpack.c.h.b16 %v195
    %v826 = vunpack.c.l.b16 %v196
    %v827 = vunpack.c.h.b16 %v196
    %v828 = vunpack.c.l.b16 %v197
    %v829 = vunpack.c.h.b16 %v197
    %v830 = vunpack.c.l.b16 %v198
    %v831 = vunpack.c.h.b16 %v198
    %v832 = vunpack.c.l.b16 %v199
    %v833 = vunpack.c.h.b16 %v199
    %v834 = vunpack.c.l.b16 %v200
    %v835 = vunpack.c.h.b16 %v200
    %v836 = vunpack.c.l.b16 %v201
    %v837 = vunpack.c.h.b16 %v201
    %v838 = vunpack.c.l.b16 %v202
    %v839 = vunpack.c.h.b16 %v202
    %v840 = vunpack.c.l.b16 %v203
    %v841 = vunpack.c.h.b16 %v203
    %v842 = vunpack.c.l.b16 %v204
    %v843 = vunpack.c.h.b16 %v204
    %v844 = vunpack.c.l.b16 %v205
    %v845 = vunpack.c.h.b16 %v205
    %v846 = vunpack.c.l.b16 %v206
    %v847 = vunpack.c.h.b16 %v206
    %v848 = vunpack.c.l.b16 %v207
    %v849 = vunpack.c.h.b16 %v207
    %v850 = vunpack.c.l.b16 %v208
    %v851 = vunpack.c.h.b16 %v208
    %v852 = vunpack.c.l.b16 %v209
    %v853 = vunpack.c.h.b16 %v209
    %v854 = vunpack.c.l.b16 %v210
    %v855 = vunpack.c.h.b16 %v210
    %v856 = vunpack.c.l.b16 %v211
    %v857 = vunpack.c.h.b16 %v211
    %v858 = vunpack.c.l.b16 %v212
    %v859 = vunpack.c.h.b16 %v212
    %v860 = vunpack.c.l.b16 %v213
    %v861 = vunpack.c.h.b16 %v213
    %v862 = vunpack.c.l.b16 %v214
    %v863 = vunpack.c.h.b16 %v214
    %v864 = vunpack.c.l.b16 %v215
    %v865 = vunpack.c.h.b16 %v215
    %v866 = vunpack.c.l.b16 %v216
    %v867 = vunpack.c.h.b16 %v216
    %v868 = vunpack.c.l.b16 %v217
    %v869 = vunpack.c.h.b16 %v217
    %v870 = vunpack.c.l.b16 %v218
    %v871 = vunpack.c.h.b16 %v218
    %v872 = vunpack.c.l.b16 %v219
    %v873 = vunpack.c.h.b16 %v219
    %v874 = vunpack.c.l.b16 %v220
    %v875 = vunpack.c.h.b16 %v220
    %v876 = vunpack.c.l.b16 %v221
    %v877 = vunpack.c.h.b16 %v221
    %v878 = vunpack.c.l.b16 %v222
    %v879 = vunpack.c.h.b16 %v222
    %v880 = vunpack.c.l.b16 %v223
    %v881 = vunpack.c.h.b16 %v223
    %v882 = vunpack.c.l.b16 %v224
    %v883 = vunpack.c.h.b16 %v224
    %v884 = vunpack.c.l.b16 %v225
    %v885 = vunpack.c.h.b16 %v225
    %v886 = vunpack.c.l.b16 %v226
    %v887 = vunpack.c.h.b16 %v226
    %v888 = vunpack.c.l.b16 %v227
    %v889 = vunpack.c.h.b16 %v227
    %v890 = vunpack.c.l.b16 %v228
    %v891 = vunpack.c.h.b16 %v228
    %v892 = vunpack.c.l.b16 %v229
    %v893 = vunpack.c.h.b16 %v229
    %v894 = vunpack.c.l.b16 %v230
    %v895 = vunpack.c.h.b16 %v230
    %v896 = vunpack.c.l.b16 %v231
    %v897 = vunpack.c.h.b16 %v231
    %v898 = vunpack.c.l.b16 %v232
    %v899 = vunpack.c.h.b16 %v232
    %v900 = vunpack.c.l.b16 %v233
    %v901 = vunpack.c.h.b16 %v233
    %v902 = vunpack.c.l.b16 %v234
    %v903 = vunpack.c.h.b16 %v234
    %v904 = vunpack.c.l.b16 %v235
    %v905 = vunpack.c.h.b16 %v235
    %v906 = vunpack.c.l.b16 %v236
    %v907 = vunpack.c.h.b16 %v236
    %v908 = vunpack.c.l.b16 %v237
    %v909 = vunpack.c.h.b16 %v237
    %v910 = vunpack.c.l.b16 %v238
    %v911 = vunpack.c.h.b16 %v238
    %v912 = vunpack.c.l.b16 %v239
    %v913 = vunpack.c.h.b16 %v239
    %v914 = vunpack.c.l.b16 %v240
    %v915 = vunpack.c.h.b16 %v240
    %v916 = vunpack.c.l.b16 %v241
    %v917 = vunpack.c.h.b16 %v241
    %v918 = vunpack.c.l.b16 %v242
    %v919 = vunpack.c.h.b16 %v242
    %v920 = vunpack.c.l.b16 %v243
    %v921 = vunpack.c.h.b16 %v243
    %v922 = vunpack.c.l.b16 %v244
    %v923 = vunpack.c.h.b16 %v244
    %v924 = vunpack.c.l.b16 %v245
    %v925 = vunpack.c.h.b16 %v245
    %v926 = vunpack.c.l.b16 %v246
    %v927 = vunpack.c.h.b16 %v246
    %v928 = vunpack.c.l.b16 %v247
    %v929 = vunpack.c.h.b16 %v247
    %v930 = vunpack.c.l.b16 %v248
    %v931 = vunpack.c.h.b16 %v248
    %v932 = vunpack.c.l.b16 %v249
    %v933 = vunpack.c.h.b16 %v249
    %v934 = vunpack.c.l.b16 %v250
    %v935 = vunpack.c.h.b16 %v250
    %v936 = vunpack.c.l.b16 %v251
    %v937 = vunpack.c.h.b16 %v251
    %v938 = vunpack.c.l.b16 %v252
    %v939 = vunpack.c.h.b16 %v252
    %v940 = vunpack.c.l.b16 %v253
    %v941 = vunpack.c.h.b16 %v253
    %v942 = vunpack.c.l.b16 %v254
    %v943 = vunpack.c.h.b16 %v254
    %v944 = vunpack.c.l.b16 %v255
    %v945 = vunpack.c.h.b16 %v255
    %v946 = vunpack.c.l.b16 %v256
    %v947 = vunpack.c.h.b16 %v256
    %v948 = vunpack.c.l.b16 %v257
    %v949 = vunpack.c.h.b16 %v257
    %v950 = vunpack.c.l.b16 %v258
    %v951 = vunpack.c.h.b16 %v258
    %v952 = vunpack.c.l.b16 %v259
    %v953 = vunpack.c.h.b16 %v259
    %v954 = vunpack.c.l.b16 %v260
    %v955 = vunpack.c.h.b16 %v260
    %v956 = vunpack.c.l.b16 %v261
    %v957 = vunpack.c.h.b16 %v261
    %v958 = vunpack.c.l.b16 %v262
    %v959 = vunpack.c.h.b16 %v262
    %v960 = vunpack.c.l.b16 %v263
    %v961 = vunpack.c.h.b16 %v263
    %v962 = vunpack.c.l.b16 %v264
    %v963 = vunpack.c.h.b16 %v264
    %v964 = vunpack.c.l.b16 %v265
    %v965 = vunpack.c.h.b16 %v265
    %v966 = vunpack.c.l.b16 %v266
    %v967 = vunpack.c.h.b16 %v266
    %v968 = vunpack.c.l.b16 %v267
    %v969 = vunpack.c.h.b16 %v267
    %v970 = vunpack.c.l.b16 %v268
    %v971 = vunpack.c.h.b16 %v268
    %v972 = vunpack.c.l.b16 %v269
    %v973 = vunpack.c.h.b16 %v269
    %v974 = vunpack.c.l.b16 %v270
    %v975 = vunpack.c.h.b16 %v270
    %v976 = vunpack.c.l.b16 %v271
    %v977 = vunpack.c.h.b16 %v271
    %v978 = vunpack.c.l.b16 %v272
    %v979 = vunpack.c.h.b16 %v272
    %v980 = vunpack.c.l.b16 %v273
    %v981 = vunpack.c.h.b16 %v273
    %v982 = vunpack.c.l.b16 %v274
    %v983 = vunpack.c.h.b16 %v274
    %v984 = vunpack.c.l.b16 %v275
    %v985 = vunpack.c.h.b16 %v275
    %v986 = vunpack.c.l.b16 %v276
    %v987 = vunpack.c.h.b16 %v276
    %v988 = vunpack.c.l.b16 %v277
    %v989 = vunpack.c.h.b16 %v277
    %v990 = vunpack.c.l.b16 %v278
    %v991 = vunpack.c.h.b16 %v278
    %v992 = vunpack.c.l.b16 %v279
    %v993 = vunpack.c.h.b16 %v279
    %v994 = vunpack.c.l.b16 %v280
    %v995 = vunpack.c.h.b16 %v280
    %v996 = vunpack.c.l.b16 %v281
    %v997 = vunpack.c.h.b16 %v281
    %v998 = vunpack.c.l.b16 %v282
    %v999 = vunpack.c.h.b16 %v282
    %v1000 = vunpack.c.l.b16 %v283
    %v1001 = vunpack.c.h.b16 %v283
    %v1002 = vunpack.c.l.b16 %v284
    %v1003 = vunpack.c.h.b16 %v284
    %v1004 = vunpack.c.l.b16 %v285
    %v1005 = vunpack.c.h.b16 %v285
    %v1006 = vunpack.c.l.b16 %v286
    %v1007 = vunpack.c.h.b16 %v286
    %v1008 = vunpack.c.l.b16 %v287
    %v1009 = vunpack.c.h.b16 %v287
    %v1010 = vunpack.c.l.b16 %v288
    %v1011 = vunpack.c.h.b16 %v288
    %v1012 = vunpack.c.l.b16 %v289
    %v1013 = vunpack.c.h.b16 %v289
    %v1014 = vunpack.c.l.b16 %v290
    %v1015 = vunpack.c.h.b16 %v290
    %v1016 = vunpack.c.l.b16 %v291
    %v1017 = vunpack.c.h.b16 %v291
    %v1018 = vunpack.c.l.b16 %v292
    %v1019 = vunpack.c.h.b16 %v292
    %v1020 = vunpack.c.l.b16 %v293
    %v1021 = vunpack.c.h.b16 %v293
    %v1022 = vunpack.c.l.b16 %v294
    %v1023 = vunpack.c.h.b16 %v294
    %v1024 = vunpack.c.l.b16 %v295
    %v1025 = vunpack.c.h.b16 %v295
    %v1026 = vunpack.c.l.b16 %v296
    %v1027 = vunpack.c.h.b16 %v296
    %v1028 = vunpack.c.l.b16 %v297
    %v1029 = vunpack.c.h.b16 %v297
    %v1030 = vunpack.c.l.b16 %v298
    %v1031 = vunpack.c.h.b16 %v298
    %v1032 = vunpack.c.l.b16 %v299
    %v1033 = vunpack.c.h.b16 %v299
    %v1034 = vunpack.c.l.b16 %v300
    %v1035 = vunpack.c.h.b16 %v300
    %v1036 = vunpack.c.l.b16 %v301
    %v1037 = vunpack.c.h.b16 %v301
    %v1038 = vunpack.c.l.b16 %v302
    %v1039 = vunpack.c.h.b16 %v302
    %v1040 = vunpack.c.l.b16 %v303
    %v1041 = vunpack.c.h.b16 %v303
    %v1042 = vunpack.c.l.b16 %v304
    %v1043 = vunpack.c.h.b16 %v304
    %v1044 = vunpack.c.l.b16 %v305
    %v1045 = vunpack.c.h.b16 %v305
    %v1046 = vunpack.c.l.b16 %v306
    %v1047 = vunpack.c.h.b16 %v306
    %v1048 = vunpack.c.l.b16 %v307
    %v1049 = vunpack.c.h.b16 %v307
    %v1050 = vunpack.c.l.b16 %v308
    %v1051 = vunpack.c.h.b16 %v308
    %v1052 = vunpack.c.l.b16 %v309
    %v1053 = vunpack.c.h.b16 %v309
    %v1054 = vunpack.c.l.b16 %v310
    %v1055 = vunpack.c.h.b16 %v310
    %v1056 = vunpack.c.l.b16 %v311
    %v1057 = vunpack.c.h.b16 %v311
    %v1058 = vunpack.c.l.b16 %v312
    %v1059 = vunpack.c.h.b16 %v312
    %v1060 = vunpack.c.l.b16 %v313
    %v1061 = vunpack.c.h.b16 %v313
    %v1062 = vunpack.c.l.b16 %v314
    %v1063 = vunpack.c.h.b16 %v314
    %v1064 = vunpack.c.l.b16 %v315
    %v1065 = vunpack.c.h.b16 %v315
    %v1066 = vunpack.c.l.b16 %v316
    %v1067 = vunpack.c.h.b16 %v316
    %v1068 = vunpack.c.l.b16 %v317
    %v1069 = vunpack.c.h.b16 %v317
    %v1070 = vunpack.c.l.b16 %v318
    %v1071 = vunpack.c.h.b16 %v318
    %v1072 = vunpack.c.l.b16 %v319
    %v1073 = vunpack.c.h.b16 %v319
    %v1074 = vunpack.c.l.b16 %v320
    %v1075 = vunpack.c.h.b16 %v320
    %v1076 = vunpack.c.l.b16 %v321
    %v1077 = vunpack.c.h.b16 %v321
    %v1078 = vunpack.c.l.b16 %v322
    %v1079 = vunpack.c.h.b16 %v322
    %v1080 = vunpack.c.l.b16 %v323
    %v1081 = vunpack.c.h.b16 %v323
    %v1082 = vunpack.c.l.b16 %v324
    %v1083 = vunpack.c.h.b16 %v324
    %v1084 = vunpack.c.l.b16 %v325
    %v1085 = vunpack.c.h.b16 %v325
    %v1086 = vunpack.c.l.b16 %v326
    %v1087 = vunpack.c.h.b16 %v326
    %v1088 = vunpack.c.l.b16 %v327
    %v1089 = vunpack.c.h.b16 %v327
    %v1090 = vunpack.c.l.b16 %v328
    %v1091 = vunpack.c.h.b16 %v328
    %v1092 = vunpack.c.l.b16 %v329
    %v1093 = vunpack.c.h.b16 %v329
    %v1094 = vunpack.c.l.b16 %v330
    %v1095 = vunpack.c.h.b16 %v330
    %v1096 = vunpack.c.l.b16 %v331
    %v1097 = vunpack.c.h.b16 %v331
    %v1098 = vunpack.c.l.b16 %v332
    %v1099 = vunpack.c.h.b16 %v332
    %v1100 = vunpack.c.l.b16 %v333
    %v1101 = vunpack.c.h.b16 %v333
    %v1102 = vunpack.c.l.b16 %v334
    %v1103 = vunpack.c.h.b16 %v334
    %v1104 = vunpack.c.l.b16 %v335
    %v1105 = vunpack.c.h.b16 %v335
    %v1106 = vunpack.c.l.b16 %v336
    %v1107 = vunpack.c.h.b16 %v336
    %v1108 = vunpack.c.l.b16 %v337
    %v1109 = vunpack.c.h.b16 %v337
    %v1110 = vunpack.c.l.b16 %v338
    %v1111 = vunpack.c.h.b16 %v338
    %v1112 = vunpack.c.l.b16 %v339
    %v1113 = vunpack.c.h.b16 %v339
    %v1114 = vunpack.c.l.b16 %v340
    %v1115 = vunpack.c.h.b16 %v340
    %v1116 = vunpack.c.l.b16 %v341
    %v1117 = vunpack.c.h.b16 %v341
    %v1118 = vunpack.c.l.b16 %v342
    %v1119 = vunpack.c.h.b16 %v342
    %v1120 = vunpack.c.l.b16 %v343
    %v1121 = vunpack.c.h.b16 %v343
    %v1122 = vunpack.c.l.b16 %v344
    %v1123 = vunpack.c.h.b16 %v344
    %v1124 = vunpack.c.l.b16 %v345
    %v1125 = vunpack.c.h.b16 %v345
    %v1126 = vpack.c.b16 %v616, %v614
    %v1127 = vpack.c.b16 %v617, %v615
    %v1128 = vpack.c.b16 %v620, %v618
    %v1129 = vpack.c.b16 %v621, %v619
    %v1130 = vpack.c.b16 %v624, %v622
    %v1131 = vpack.c.b16 %v625, %v623
    %v1132 = vpack.c.b16 %v628, %v626
    %v1133 = vpack.c.b16 %v629, %v627
    %v1134 = vpack.c.b16 %v632, %v630
    %v1135 = vpack.c.b16 %v633, %v631
    %v1136 = vpack.c.b16 %v636, %v634
    %v1137 = vpack.c.b16 %v637, %v635
    %v1138 = vpack.c.b16 %v640, %v638
    %v1139 = vpack.c.b16 %v641, %v639
    %v1140 = vpack.c.b16 %v644, %v642
    %v1141 = vpack.c.b16 %v645, %v643
    %v1142 = vpack.c.b16 %v648, %v646
    %v1143 = vpack.c.b16 %v649, %v647
    %v1144 = vpack.c.b16 %v652, %v650
    %v1145 = vpack.c.b16 %v653, %v651
    %v1146 = vpack.c.b16 %v656, %v654
    %v1147 = vpack.c.b16 %v657, %v655
    %v1148 = vpack.c.b16 %v660, %v658
    %v1149 = vpack.c.b16 %v661, %v659
    %v1150 = vpack.c.b16 %v664, %v662
    %v1151 = vpack.c.b16 %v665, %v663
    %v1152 = vpack.c.b16 %v668, %v666
    %v1153 = vpack.c.b16 %v669, %v667
    %v1154 = vpack.c.b16 %v672, %v670
    %v1155 = vpack.c.b16 %v673, %v671
    %v1156 = vpack.c.b16 %v676, %v674
    %v1157 = vpack.c.b16 %v677, %v675
    %v1158 = vpack.c.b16 %v680, %v678
    %v1159 = vpack.c.b16 %v681, %v679
    %v1160 = vpack.c.b16 %v684, %v682
    %v1161 = vpack.c.b16 %v685, %v683
    %v1162 = vpack.c.b16 %v688, %v686
    %v1163 = vpack.c.b16 %v689, %v687
    %v1164 = vpack.c.b16 %v692, %v690
    %v1165 = vpack.c.b16 %v693, %v691
    %v1166 = vpack.c.b16 %v696, %v694
    %v1167 = vpack.c.b16 %v697, %v695
    %v1168 = vpack.c.b16 %v700, %v698
    %v1169 = vpack.c.b16 %v701, %v699
    %v1170 = vpack.c.b16 %v704, %v702
    %v1171 = vpack.c.b16 %v705, %v703
    %v1172 = vpack.c.b16 %v708, %v706
    %v1173 = vpack.c.b16 %v709, %v707
    %v1174 = vpack.c.b16 %v712, %v710
    %v1175 = vpack.c.b16 %v713, %v711
    %v1176 = vpack.c.b16 %v716, %v714
    %v1177 = vpack.c.b16 %v717, %v715
    %v1178 = vpack.c.b16 %v720, %v718
    %v1179 = vpack.c.b16 %v721, %v719
    %v1180 = vpack.c.b16 %v724, %v722
    %v1181 = vpack.c.b16 %v725, %v723
    %v1182 = vpack.c.b16 %v728, %v726
    %v1183 = vpack.c.b16 %v729, %v727
    %v1184 = vpack.c.b16 %v732, %v730
    %v1185 = vpack.c.b16 %v733, %v731
    %v1186 = vpack.c.b16 %v736, %v734
    %v1187 = vpack.c.b16 %v737, %v735
    %v1188 = vpack.c.b16 %v740, %v738
    %v1189 = vpack.c.b16 %v741, %v739
    %v1190 = vpack.c.b16 %v744, %v742
    %v1191 = vpack.c.b16 %v745, %v743
    %v1192 = vpack.c.b16 %v748, %v746
    %v1193 = vpack.c.b16 %v749, %v747
    %v1194 = vpack.c.b16 %v752, %v750
    %v1195 = vpack.c.b16 %v753, %v751
    %v1196 = vpack.c.b16 %v756, %v754
    %v1197 = vpack.c.b16 %v757, %v755
    %v1198 = vpack.c.b16 %v760, %v758
    %v1199 = vpack.c.b16 %v761, %v759
    %v1200 = vpack.c.b16 %v764, %v762
    %v1201 = vpack.c.b16 %v765, %v763
    %v1202 = vpack.c.b16 %v768, %v766
    %v1203 = vpack.c.b16 %v769, %v767
    %v1204 = vpack.c.b16 %v772, %v770
    %v1205 = vpack.c.b16 %v773, %v771
    %v1206 = vpack.c.b16 %v776, %v774
    %v1207 = vpack.c.b16 %v777, %v775
    %v1208 = vpack.c.b16 %v780, %v778
    %v1209 = vpack.c.b16 %v781, %v779
    %v1210 = vpack.c.b16 %v784, %v782
    %v1211 = vpack.c.b16 %v785, %v783
    %v1212 = vpack.c.b16 %v788, %v786
    %v1213 = vpack.c.b16 %v789, %v787
    %v1214 = vpack.c.b16 %v792, %v790
    %v1215 = vpack.c.b16 %v793, %v791
    %v1216 = vpack.c.b16 %v796, %v794
    %v1217 = vpack.c.b16 %v797, %v795
    %v1218 = vpack.c.b16 %v800, %v798
    %v1219 = vpack.c.b16 %v801, %v799
    %v1220 = vpack.c.b16 %v804, %v802
    %v1221 = vpack.c.b16 %v805, %v803
    %v1222 = vpack.c.b16 %v808, %v806
    %v1223 = vpack.c.b16 %v809, %v807
    %v1224 = vpack.c.b16 %v812, %v810
    %v1225 = vpack.c.b16 %v813, %v811
    %v1226 = vpack.c.b16 %v816, %v814
    %v1227 = vpack.c.b16 %v817, %v815
    %v1228 = vpack.c.b16 %v820, %v818
    %v1229 = vpack.c.b16 %v821, %v819
    %v1230 = vpack.c.b16 %v824, %v822
    %v1231 = vpack.c.b16 %v825, %v823
    %v1232 = vpack.c.b16 %v828, %v826
    %v1233 = vpack.c.b16 %v829, %v827
    %v1234 = vpack.c.b16 %v832, %v830
    %v1235 = vpack.c.b16 %v833, %v831
    %v1236 = vpack.c.b16 %v836, %v834
    %v1237 = vpack.c.b16 %v837, %v835
    %v1238 = vpack.c.b16 %v840, %v838
    %v1239 = vpack.c.b16 %v841, %v839
    %v1240 = vpack.c.b16 %v844, %v842
    %v1241 = vpack.c.b16 %v845, %v843
    %v1242 = vpack.c.b16 %v848, %v846
    %v1243 = vpack.c.b16 %v849, %v847
    %v1244 = vpack.c.b16 %v852, %v850
    %v1245 = vpack.c.b16 %v853, %v851
    %v1246 = vpack.c.b16 %v856, %v854
    %v1247 = vpack.c.b16 %v857, %v855
    %v1248 = vpack.c.b16 %v860, %v858
    %v1249 = vpack.c.b16 %v861, %v859
    %v1250 = vpack.c.b16 %v864, %v862
    %v1251 = vpack.c.b16 %v865, %v863
    %v1252 = vpack.c.b16 %v868, %v866
    %v1253 = vpack.c.b16 %v869, %v867
    %v1254 = vpack.c.b16 %v872, %v870
    %v1255 = vpack.c.b16 %v873, %v871
    %v1256 = vpack.c.b16 %v876, %v874
    %v1257 = vpack.c.b16 %v877, %v875
    %v1258 = vpack.c.b16 %v880, %v878
    %v1259 = vpack.c.b16 %v881, %v879
    %v1260 = vpack.c.b16 %v884, %v882
    %v1261 = vpack.c.b16 %v885, %v883
    %v1262 = vpack.c.b16 %v888, %v886
    %v1263 = vpack.c.b16 %v889, %v887
    %v1264 = vpack.c.b16 %v892, %v890
    %v1265 = vpack.c.b16 %v893, %v891
    %v1266 = vpack.c.b16 %v896, %v894
    %v1267 = vpack.c.b16 %v897, %v895
    %v1268 = vpack.c.b16 %v900, %v898
    %v1269 = vpack.c.b16 %v901, %v899
    %v1270 = vpack.c.b16 %v904, %v902
    %v1271 = vpack.c.b16 %v905, %v903
    %v1272 = vpack.c.b16 %v908, %v906
    %v1273 = vpack.c.b16 %v909, %v907
    %v1274 = vpack.c.b16 %v912, %v910
    %v1275 = vpack.c.b16 %v913, %v911
    %v1276 = vpack.c.b16 %v916, %v914
    %v1277 = vpack.c.b16 %v917, %v915
    %v1278 = vpack.c.b16 %v920, %v918
    %v1279 = vpack.c.b16 %v921, %v919
    %v1280 = vpack.c.b16 %v924, %v922
    %v1281 = vpack.c.b16 %v925, %v923
    %v1282 = vpack.c.b16 %v928, %v926
    %v1283 = vpack.c.b16 %v929, %v927
    %v1284 = vpack.c.b16 %v932, %v930
    %v1285 = vpack.c.b16 %v933, %v931
    %v1286 = vpack.c.b16 %v936, %v934
    %v1287 = vpack.c.b16 %v937, %v935
    %v1288 = vpack.c.b16 %v940, %v938
    %v1289 = vpack.c.b16 %v941, %v939
    %v1290 = vpack.c.b16 %v944, %v942
    %v1291 = vpack.c.b16 %v945, %v943
    %v1292 = vpack.c.b16 %v948, %v946
    %v1293 = vpack.c.b16 %v949, %v947
    %v1294 = vpack.c.b16 %v952, %v950
    %v1295 = vpack.c.b16 %v953, %v951
    %v1296 = vpack.c.b16 %v956, %v954
    %v1297 = vpack.c.b16 %v957, %v955
    %v1298 = vpack.c.b16 %v960, %v958
    %v1299 = vpack.c.b16 %v961, %v959
    %v1300 = vpack.c.b16 %v964, %v962
    %v1301 = vpack.c.b16 %v965, %v963
    %v1302 = vpack.c.b16 %v968, %v966
    %v1303 = vpack.c.b16 %v969, %v967
    %v1304 = vpack.c.b16 %v972, %v970
    %v1305 = vpack.c.b16 %v973, %v971
    %v1306 = vpack.c.b16 %v976, %v974
    %v1307 = vpack.c.b16 %v977, %v975
    %v1308 = vpack.c.b16 %v980, %v978
    %v1309 = vpack.c.b16 %v981, %v979
    %v1310 = vpack.c.b16 %v984, %v982
    %v1311 = vpack.c.b16 %v985, %v983
    %v1312 = vpack.c.b16 %v988, %v986
    %v1313 = vpack.c.b16 %v989, %v987
    %v1314 = vpack.c.b16 %v992, %v990
    %v1315 = vpack.c.b16 %v993, %v991
    %v1316 = vpack.c.b16 %v996, %v994
    %v1317 = vpack.c.b16 %v997, %v995
    %v1318 = vpack.c.b16 %v1000, %v998
    %v1319 = vpack.c.b16 %v1001, %v999
    %v1320 = vpack.c.b16 %v1004, %v1002
    %v1321 = vpack.c.b16 %v1005, %v1003
    %v1322 = vpack.c.b16 %v1008, %v1006
    %v1323 = vpack.c.b16 %v1009, %v1007
    %v1324 = vpack.c.b16 %v1012, %v1010
    %v1325 = vpack.c.b16 %v1013, %v1011
    %v1326 = vpack.c.b16 %v1016, %v1014
    %v1327 = vpack.c.b16 %v1017, %v1015
    %v1328 = vpack.c.b16 %v1020, %v1018
    %v1329 = vpack.c.b16 %v1021, %v1019
    %v1330 = vpack.c.b16 %v1024, %v1022
    %v1331 = vpack.c.b16 %v1025, %v1023
    %v1332 = vpack.c.b16 %v1028, %v1026
    %v1333 = vpack.c.b16 %v1029, %v1027
    %v1334 = vpack.c.b16 %v1032, %v1030
    %v1335 = vpack.c.b16 %v1033, %v1031
    %v1336 = vpack.c.b16 %v1036, %v1034
    %v1337 = vpack.c.b16 %v1037, %v1035
    %v1338 = vpack.c.b16 %v1040, %v1038
    %v1339 = vpack.c.b16 %v1041, %v1039
    %v1340 = vpack.c.b16 %v1044, %v1042
    %v1341 = vpack.c.b16 %v1045, %v1043
    %v1342 = vpack.c.b16 %v1048, %v1046
    %v1343 = vpack.c.b16 %v1049, %v1047
    %v1344 = vpack.c.b16 %v1052, %v1050
    %v1345 = vpack.c.b16 %v1053, %v1051
    %v1346 = vpack.c.b16 %v1056, %v1054
    %v1347 = vpack.c.b16 %v1057, %v1055
    %v1348 = vpack.c.b16 %v1060, %v1058
    %v1349 = vpack.c.b16 %v1061, %v1059
    %v1350 = vpack.c.b16 %v1064, %v1062
    %v1351 = vpack.c.b16 %v1065, %v1063
    %v1352 = vpack.c.b16 %v1068, %v1066
    %v1353 = vpack.c.b16 %v1069, %v1067
    %v1354 = vpack.c.b16 %v1072, %v1070
    %v1355 = vpack.c.b16 %v1073, %v1071
    %v1356 = vpack.c.b16 %v1076, %v1074
    %v1357 = vpack.c.b16 %v1077, %v1075
    %v1358 = vpack.c.b16 %v1080, %v1078
    %v1359 = vpack.c.b16 %v1081, %v1079
    %v1360 = vpack.c.b16 %v1084, %v1082
    %v1361 = vpack.c.b16 %v1085, %v1083
    %v1362 = vpack.c.b16 %v1088, %v1086
    %v1363 = vpack.c.b16 %v1089, %v1087
    %v1364 = vpack.c.b16 %v1092, %v1090
    %v1365 = vpack.c.b16 %v1093, %v1091
    %v1366 = vpack.c.b16 %v1096, %v1094
    %v1367 = vpack.c.b16 %v1097, %v1095
    %v1368 = vpack.c.b16 %v1100, %v1098
    %v1369 = vpack.c.b16 %v1101, %v1099
    %v1370 = vpack.c.b16 %v1104, %v1102
    %v1371 = vpack.c.b16 %v1105, %v1103
    %v1372 = vpack.c.b16 %v1108, %v1106
    %v1373 = vpack.c.b16 %v1109, %v1107
    %v1374 = vpack.c.b16 %v1112, %v1110
    %v1375 = vpack.c.b16 %v1113, %v1111
    %v1376 = vpack.c.b16 %v1116, %v1114
    %v1377 = vpack.c.b16 %v1117, %v1115
    %v1378 = vpack.c.b16 %v1120, %v1118
    %v1379 = vpack.c.b16 %v1121, %v1119
    %v1380 = vpack.c.b16 %v1124, %v1122
    %v1381 = vpack.c.b16 %v1125, %v1123
    %1638 = vmatprep.subr.bf16.mxu0 %v1127
    %1639 = vmatpush1.bf16.msra.mxu0 %v1126
    %1640 = vmatprep.subr.bf16.mxu0 %v1129
    %1641 = vmatpush1.bf16.msra.mxu0 %v1128
    %1642 = vmatprep.subr.bf16.mxu0 %v1131
    %1643 = vmatpush1.bf16.msra.mxu0 %v1130
    %1644 = vmatprep.subr.bf16.mxu0 %v1133
    %1645 = vmatpush1.bf16.msra.mxu0 %v1132
    %1646 = vmatprep.subr.bf16.mxu0 %v1135
    %1647 = vmatpush1.bf16.msra.mxu0 %v1134
    %1648 = vmatprep.subr.bf16.mxu0 %v1137
    %1649 = vmatpush1.bf16.msra.mxu0 %v1136
    %1650 = vmatprep.subr.bf16.mxu0 %v1139
    %1651 = vmatpush1.bf16.msra.mxu0 %v1138
    %1652 = vmatprep.subr.bf16.mxu0 %v1141
    %1653 = vmatpush1.bf16.msra.mxu0 %v1140
    %1654 = vmatprep.subr.bf16.mxu0 %v1143
    %1655 = vmatpush1.bf16.msra.mxu0 %v1142
    %1656 = vmatprep.subr.bf16.mxu0 %v1145
    %1657 = vmatpush1.bf16.msra.mxu0 %v1144
    %1658 = vmatprep.subr.bf16.mxu0 %v1147
    %1659 = vmatpush1.bf16.msra.mxu0 %v1146
    %1660 = vmatprep.subr.bf16.mxu0 %v1149
    %1661 = vmatpush1.bf16.msra.mxu0 %v1148
    %1662 = vmatprep.subr.bf16.mxu0 %v1151
    %1663 = vmatpush1.bf16.msra.mxu0 %v1150
    %1664 = vmatprep.subr.bf16.mxu0 %v1153
    %1665 = vmatpush1.bf16.msra.mxu0 %v1152
    %1666 = vmatprep.subr.bf16.mxu0 %v1155
    %1667 = vmatpush1.bf16.msra.mxu0 %v1154
    %1668 = vmatprep.subr.bf16.mxu0 %v1157
    %1669 = vmatpush1.bf16.msra.mxu0 %v1156
    %1670 = vmatprep.mubr.bf16.mxu0 %v75
    %1671 = vmatmul.mubr.bf16.gmra.mrb[0].mxu0 %v74
    %v1672 = vpop.f32.mrb[0].mxu0
    %v1673 = vadd.f32 %v351, %v1672
    %v1674 = vpop.f32.mrb[0].mxu0
    %v1675 = vadd.f32 %v355, %v1674
    %v1676 = vpop.f32.mrb[0].mxu0
    %v1677 = vadd.f32 %v351, %v1676
    %v1678 = vpop.f32.mrb[0].mxu0
    %v1679 = vadd.f32 %v355, %v1678
    %1680 = vdwg.mxu0
    %1681 = vmatprep.subr.bf16.mxu0 %v1159
    %1682 = vmatpush1.bf16.msra.mxu0 %v1158
    %1683 = vmatprep.subr.bf16.mxu0 %v1161
    %1684 = vmatpush1.bf16.msra.mxu0 %v1160
    %1685 = vmatprep.subr.bf16.mxu0 %v1163
    %1686 = vmatpush1.bf16.msra.mxu0 %v1162
    %1687 = vmatprep.subr.bf16.mxu0 %v1165
    %1688 = vmatpush1.bf16.msra.mxu0 %v1164
    %1689 = vmatprep.subr.bf16.mxu0 %v1167
    %1690 = vmatpush1.bf16.msra.mxu0 %v1166
    %1691 = vmatprep.subr.bf16.mxu0 %v1169
    %1692 = vmatpush1.bf16.msra.mxu0 %v1168
    %1693 = vmatprep.subr.bf16.mxu0 %v1171
    %1694 = vmatpush1.bf16.msra.mxu0 %v1170
    %1695 = vmatprep.subr.bf16.mxu0 %v1173
    %1696 = vmatpush1.bf16.msra.mxu0 %v1172
    %1697 = vmatprep.subr.bf16.mxu0 %v1175
    %1698 = vmatpush1.bf16.msra.mxu0 %v1174
    %1699 = vmatprep.subr.bf16.mxu0 %v1177
    %1700 = vmatpush1.bf16.msra.mxu0 %v1176
    %1701 = vmatprep.subr.bf16.mxu0 %v1179
    %1702 = vmatpush1.bf16.msra.mxu0 %v1178
    %1703 = vmatprep.subr.bf16.mxu0 %v1181
    %1704 = vmatpush1.bf16.msra.mxu0 %v1180
    %1705 = vmatprep.subr.bf16.mxu0 %v1183
    %1706 = vmatpush1.bf16.msra.mxu0 %v1182
    %1707 = vmatprep.subr.bf16.mxu0 %v1185
    %1708 = vmatpush1.bf16.msra.mxu0 %v1184
    %1709 = vmatprep.subr.bf16.mxu0 %v1187
    %1710 = vmatpush1.bf16.msra.mxu0 %v1186
    %1711 = vmatprep.subr.bf16.mxu0 %v1189
    %1712 = vmatpush1.bf16.msra.mxu0 %v1188
    %1713 = vmatprep.mubr.bf16.mxu0 %v77
    %1714 = vmatmul.mubr.bf16.gmra.mrb[0].mxu0 %v76
    %v1715 = vpop.f32.mrb[0].mxu0
    %v1716 = vadd.f32 %v1673, %v1715
    %v1717 = vpop.f32.mrb[0].mxu0
    %v1718 = vadd.f32 %v1675, %v1717
    %v1719 = vpop.f32.mrb[0].mxu0
    %v1720 = vadd.f32 %v1677, %v1719
    %v1721 = vpop.f32.mrb[0].mxu0
    %v1722 = vadd.f32 %v1679, %v1721
    %1723 = vdwg.mxu0
    %1724 = vmatprep.subr.bf16.mxu0 %v1191
    %1725 = vmatpush1.bf16.msra.mxu0 %v1190
    %1726 = vmatprep.subr.bf16.mxu0 %v1193
    %1727 = vmatpush1.bf16.msra.mxu0 %v1192
    %1728 = vmatprep.subr.bf16.mxu0 %v1195
    %1729 = vmatpush1.bf16.msra.mxu0 %v1194
    %1730 = vmatprep.subr.bf16.mxu0 %v1197
    %1731 = vmatpush1.bf16.msra.mxu0 %v1196
    %1732 = vmatprep.subr.bf16.mxu0 %v1199
    %1733 = vmatpush1.bf16.msra.mxu0 %v1198
    %1734 = vmatprep.subr.bf16.mxu0 %v1201
    %1735 = vmatpush1.bf16.msra.mxu0 %v1200
    %1736 = vmatprep.subr.bf16.mxu0 %v1203
    %1737 = vmatpush1.bf16.msra.mxu0 %v1202
    %1738 = vmatprep.subr.bf16.mxu0 %v1205
    %1739 = vmatpush1.bf16.msra.mxu0 %v1204
    %1740 = vmatprep.subr.bf16.mxu0 %v1207
    %1741 = vmatpush1.bf16.msra.mxu0 %v1206
    %1742 = vmatprep.subr.bf16.mxu0 %v1209
    %1743 = vmatpush1.bf16.msra.mxu0 %v1208
    %1744 = vmatprep.subr.bf16.mxu0 %v1211
    %1745 = vmatpush1.bf16.msra.mxu0 %v1210
    %1746 = vmatprep.subr.bf16.mxu0 %v1213
    %1747 = vmatpush1.bf16.msra.mxu0 %v1212
    %1748 = vmatprep.subr.bf16.mxu0 %v1215
    %1749 = vmatpush1.bf16.msra.mxu0 %v1214
    %1750 = vmatprep.subr.bf16.mxu0 %v1217
    %1751 = vmatpush1.bf16.msra.mxu0 %v1216
    %1752 = vmatprep.subr.bf16.mxu0 %v1219
    %1753 = vmatpush1.bf16.msra.mxu0 %v1218
    %1754 = vmatprep.subr.bf16.mxu0 %v1221
    %1755 = vmatpush1.bf16.msra.mxu0 %v1220
    %1756 = vmatprep.mubr.bf16.mxu0 %v79
    %1757 = vmatmul.mubr.bf16.gmra.mrb[0].mxu0 %v78
    %v1758 = vpop.f32.mrb[0].mxu0
    %v1759 = vadd.f32 %v1716, %v1758
    %v1760 = vpop.f32.mrb[0].mxu0
    %v1761 = vadd.f32 %v1718, %v1760
    %v1762 = vpop.f32.mrb[0].mxu0
    %v1763 = vadd.f32 %v1720, %v1762
    %v1764 = vpop.f32.mrb[0].mxu0
    %v1765 = vadd.f32 %v1722, %v1764
    %1766 = vdwg.mxu0
    %1767 = vmatprep.subr.bf16.mxu0 %v1223
    %1768 = vmatpush1.bf16.msra.mxu0 %v1222
    %1769 = vmatprep.subr.bf16.mxu0 %v1225
    %1770 = vmatpush1.bf16.msra.mxu0 %v1224
    %1771 = vmatprep.subr.bf16.mxu0 %v1227
    %1772 = vmatpush1.bf16.msra.mxu0 %v1226
    %1773 = vmatprep.subr.bf16.mxu0 %v1229
    %1774 = vmatpush1.bf16.msra.mxu0 %v1228
    %1775 = vmatprep.subr.bf16.mxu0 %v1231
    %1776 = vmatpush1.bf16.msra.mxu0 %v1230
    %1777 = vmatprep.subr.bf16.mxu0 %v1233
    %1778 = vmatpush1.bf16.msra.mxu0 %v1232
    %1779 = vmatprep.subr.bf16.mxu0 %v1235
    %1780 = vmatpush1.bf16.msra.mxu0 %v1234
    %1781 = vmatprep.subr.bf16.mxu0 %v1237
    %1782 = vmatpush1.bf16.msra.mxu0 %v1236
    %1783 = vmatprep.subr.bf16.mxu0 %v1239
    %1784 = vmatpush1.bf16.msra.mxu0 %v1238
    %1785 = vmatprep.subr.bf16.mxu0 %v1241
    %1786 = vmatpush1.bf16.msra.mxu0 %v1240
    %1787 = vmatprep.subr.bf16.mxu0 %v1243
    %1788 = vmatpush1.bf16.msra.mxu0 %v1242
    %1789 = vmatprep.subr.bf16.mxu0 %v1245
    %1790 = vmatpush1.bf16.msra.mxu0 %v1244
    %1791 = vmatprep.subr.bf16.mxu0 %v1247
    %1792 = vmatpush1.bf16.msra.mxu0 %v1246
    %1793 = vmatprep.subr.bf16.mxu0 %v1249
    %1794 = vmatpush1.bf16.msra.mxu0 %v1248
    %1795 = vmatprep.subr.bf16.mxu0 %v1251
    %1796 = vmatpush1.bf16.msra.mxu0 %v1250
    %1797 = vmatprep.subr.bf16.mxu0 %v1253
    %1798 = vmatpush1.bf16.msra.mxu0 %v1252
    %1799 = vmatprep.mubr.bf16.mxu0 %v81
    %1800 = vmatmul.mubr.bf16.gmra.mrb[0].mxu0 %v80
    %v1801 = vpop.f32.mrb[0].mxu0
    %v1802 = vadd.f32 %v1759, %v1801
    %v1803 = vpop.f32.mrb[0].mxu0
    %v1804 = vadd.f32 %v1761, %v1803
    %v1805 = vpop.f32.mrb[0].mxu0
    %v1806 = vadd.f32 %v1763, %v1805
    %v1807 = vpop.f32.mrb[0].mxu0
    %v1808 = vadd.f32 %v1765, %v1807
    %1809 = vdwg.mxu0
    %1810 = vmatprep.subr.bf16.mxu0 %v1255
    %1811 = vmatpush1.bf16.msra.mxu0 %v1254
    %1812 = vmatprep.subr.bf16.mxu0 %v1257
    %1813 = vmatpush1.bf16.msra.mxu0 %v1256
    %1814 = vmatprep.subr.bf16.mxu0 %v1259
    %1815 = vmatpush1.bf16.msra.mxu0 %v1258
    %1816 = vmatprep.subr.bf16.mxu0 %v1261
    %1817 = vmatpush1.bf16.msra.mxu0 %v1260
    %1818 = vmatprep.subr.bf16.mxu0 %v1263
    %1819 = vmatpush1.bf16.msra.mxu0 %v1262
    %1820 = vmatprep.subr.bf16.mxu0 %v1265
    %1821 = vmatpush1.bf16.msra.mxu0 %v1264
    %1822 = vmatprep.subr.bf16.mxu0 %v1267
    %1823 = vmatpush1.bf16.msra.mxu0 %v1266
    %1824 = vmatprep.subr.bf16.mxu0 %v1269
    %1825 = vmatpush1.bf16.msra.mxu0 %v1268
    %1826 = vmatprep.subr.bf16.mxu0 %v1271
    %1827 = vmatpush1.bf16.msra.mxu0 %v1270
    %1828 = vmatprep.subr.bf16.mxu0 %v1273
    %1829 = vmatpush1.bf16.msra.mxu0 %v1272
    %1830 = vmatprep.subr.bf16.mxu0 %v1275
    %1831 = vmatpush1.bf16.msra.mxu0 %v1274
    %1832 = vmatprep.subr.bf16.mxu0 %v1277
    %1833 = vmatpush1.bf16.msra.mxu0 %v1276
    %1834 = vmatprep.subr.bf16.mxu0 %v1279
    %1835 = vmatpush1.bf16.msra.mxu0 %v1278
    %1836 = vmatprep.subr.bf16.mxu0 %v1281
    %1837 = vmatpush1.bf16.msra.mxu0 %v1280
    %1838 = vmatprep.subr.bf16.mxu0 %v1283
    %1839 = vmatpush1.bf16.msra.mxu0 %v1282
    %1840 = vmatprep.subr.bf16.mxu0 %v1285
    %1841 = vmatpush1.bf16.msra.mxu0 %v1284
    %1842 = vmatprep.mubr.bf16.mxu0 %v83
    %1843 = vmatmul.mubr.bf16.gmra.mrb[0].mxu0 %v82
    %v1844 = vpop.f32.mrb[0].mxu0
    %v1845 = vadd.f32 %v1802, %v1844
    %v1846 = vpop.f32.mrb[0].mxu0
    %v1847 = vadd.f32 %v1804, %v1846
    %v1848 = vpop.f32.mrb[0].mxu0
    %v1849 = vadd.f32 %v1806, %v1848
    %v1850 = vpop.f32.mrb[0].mxu0
    %v1851 = vadd.f32 %v1808, %v1850
    %1852 = vdwg.mxu0
    %1853 = vmatprep.subr.bf16.mxu0 %v1287
    %1854 = vmatpush1.bf16.msra.mxu0 %v1286
    %1855 = vmatprep.subr.bf16.mxu0 %v1289
    %1856 = vmatpush1.bf16.msra.mxu0 %v1288
    %1857 = vmatprep.subr.bf16.mxu0 %v1291
    %1858 = vmatpush1.bf16.msra.mxu0 %v1290
    %1859 = vmatprep.subr.bf16.mxu0 %v1293
    %1860 = vmatpush1.bf16.msra.mxu0 %v1292
    %1861 = vmatprep.subr.bf16.mxu0 %v1295
    %1862 = vmatpush1.bf16.msra.mxu0 %v1294
    %1863 = vmatprep.subr.bf16.mxu0 %v1297
    %1864 = vmatpush1.bf16.msra.mxu0 %v1296
    %1865 = vmatprep.subr.bf16.mxu0 %v1299
    %1866 = vmatpush1.bf16.msra.mxu0 %v1298
    %1867 = vmatprep.subr.bf16.mxu0 %v1301
    %1868 = vmatpush1.bf16.msra.mxu0 %v1300
    %1869 = vmatprep.subr.bf16.mxu0 %v1303
    %1870 = vmatpush1.bf16.msra.mxu0 %v1302
    %1871 = vmatprep.subr.bf16.mxu0 %v1305
    %1872 = vmatpush1.bf16.msra.mxu0 %v1304
    %1873 = vmatprep.subr.bf16.mxu0 %v1307
    %1874 = vmatpush1.bf16.msra.mxu0 %v1306
    %1875 = vmatprep.subr.bf16.mxu0 %v1309
    %1876 = vmatpush1.bf16.msra.mxu0 %v1308
    %1877 = vmatprep.subr.bf16.mxu0 %v1311
    %1878 = vmatpush1.bf16.msra.mxu0 %v1310
    %1879 = vmatprep.subr.bf16.mxu0 %v1313
    %1880 = vmatpush1.bf16.msra.mxu0 %v1312
    %1881 = vmatprep.subr.bf16.mxu0 %v1315
    %1882 = vmatpush1.bf16.msra.mxu0 %v1314
    %1883 = vmatprep.subr.bf16.mxu0 %v1317
    %1884 = vmatpush1.bf16.msra.mxu0 %v1316
    %1885 = vmatprep.mubr.bf16.mxu0 %v85
    %1886 = vmatmul.mubr.bf16.gmra.mrb[0].mxu0 %v84
    %v1887 = vpop.f32.mrb[0].mxu0
    %v1888 = vadd.f32 %v1845, %v1887
    %v1889 = vpop.f32.mrb[0].mxu0
    %v1890 = vadd.f32 %v1847, %v1889
    %v1891 = vpop.f32.mrb[0].mxu0
    %v1892 = vadd.f32 %v1849, %v1891
    %v1893 = vpop.f32.mrb[0].mxu0
    %v1894 = vadd.f32 %v1851, %v1893
    %1895 = vdwg.mxu0
    %1896 = vmatprep.subr.bf16.mxu0 %v1319
    %1897 = vmatpush1.bf16.msra.mxu0 %v1318
    %1898 = vmatprep.subr.bf16.mxu0 %v1321
    %1899 = vmatpush1.bf16.msra.mxu0 %v1320
    %1900 = vmatprep.subr.bf16.mxu0 %v1323
    %1901 = vmatpush1.bf16.msra.mxu0 %v1322
    %1902 = vmatprep.subr.bf16.mxu0 %v1325
    %1903 = vmatpush1.bf16.msra.mxu0 %v1324
    %1904 = vmatprep.subr.bf16.mxu0 %v1327
    %1905 = vmatpush1.bf16.msra.mxu0 %v1326
    %1906 = vmatprep.subr.bf16.mxu0 %v1329
    %1907 = vmatpush1.bf16.msra.mxu0 %v1328
    %1908 = vmatprep.subr.bf16.mxu0 %v1331
    %1909 = vmatpush1.bf16.msra.mxu0 %v1330
    %1910 = vmatprep.subr.bf16.mxu0 %v1333
    %1911 = vmatpush1.bf16.msra.mxu0 %v1332
    %1912 = vmatprep.subr.bf16.mxu0 %v1335
    %1913 = vmatpush1.bf16.msra.mxu0 %v1334
    %1914 = vmatprep.subr.bf16.mxu0 %v1337
    %1915 = vmatpush1.bf16.msra.mxu0 %v1336
    %1916 = vmatprep.subr.bf16.mxu0 %v1339
    %1917 = vmatpush1.bf16.msra.mxu0 %v1338
    %1918 = vmatprep.subr.bf16.mxu0 %v1341
    %1919 = vmatpush1.bf16.msra.mxu0 %v1340
    %1920 = vmatprep.subr.bf16.mxu0 %v1343
    %1921 = vmatpush1.bf16.msra.mxu0 %v1342
    %1922 = vmatprep.subr.bf16.mxu0 %v1345
    %1923 = vmatpush1.bf16.msra.mxu0 %v1344
    %1924 = vmatprep.subr.bf16.mxu0 %v1347
    %1925 = vmatpush1.bf16.msra.mxu0 %v1346
    %1926 = vmatprep.subr.bf16.mxu0 %v1349
    %1927 = vmatpush1.bf16.msra.mxu0 %v1348
    %1928 = vmatprep.mubr.bf16.mxu0 %v87
    %1929 = vmatmul.mubr.bf16.gmra.mrb[0].mxu0 %v86
    %v1930 = vpop.f32.mrb[0].mxu0
    %v1931 = vadd.f32 %v1888, %v1930
    %v1932 = vpop.f32.mrb[0].mxu0
    %v1933 = vadd.f32 %v1890, %v1932
    %v1934 = vpop.f32.mrb[0].mxu0
    %v1935 = vadd.f32 %v1892, %v1934
    %v1936 = vpop.f32.mrb[0].mxu0
    %v1937 = vadd.f32 %v1894, %v1936
    %1938 = vdwg.mxu0
    %1939 = vmatprep.subr.bf16.mxu0 %v1351
    %1940 = vmatpush1.bf16.msra.mxu0 %v1350
    %1941 = vmatprep.subr.bf16.mxu0 %v1353
    %1942 = vmatpush1.bf16.msra.mxu0 %v1352
    %1943 = vmatprep.subr.bf16.mxu0 %v1355
    %1944 = vmatpush1.bf16.msra.mxu0 %v1354
    %1945 = vmatprep.subr.bf16.mxu0 %v1357
    %1946 = vmatpush1.bf16.msra.mxu0 %v1356
    %1947 = vmatprep.subr.bf16.mxu0 %v1359
    %1948 = vmatpush1.bf16.msra.mxu0 %v1358
    %1949 = vmatprep.subr.bf16.mxu0 %v1361
    %1950 = vmatpush1.bf16.msra.mxu0 %v1360
    %1951 = vmatprep.subr.bf16.mxu0 %v1363
    %1952 = vmatpush1.bf16.msra.mxu0 %v1362
    %1953 = vmatprep.subr.bf16.mxu0 %v1365
    %1954 = vmatpush1.bf16.msra.mxu0 %v1364
    %1955 = vmatprep.subr.bf16.mxu0 %v1367
    %1956 = vmatpush1.bf16.msra.mxu0 %v1366
    %1957 = vmatprep.subr.bf16.mxu0 %v1369
    %1958 = vmatpush1.bf16.msra.mxu0 %v1368
    %1959 = vmatprep.subr.bf16.mxu0 %v1371
    %1960 = vmatpush1.bf16.msra.mxu0 %v1370
    %1961 = vmatprep.subr.bf16.mxu0 %v1373
    %1962 = vmatpush1.bf16.msra.mxu0 %v1372
    %1963 = vmatprep.subr.bf16.mxu0 %v1375
    %1964 = vmatpush1.bf16.msra.mxu0 %v1374
    %1965 = vmatprep.subr.bf16.mxu0 %v1377
    %1966 = vmatpush1.bf16.msra.mxu0 %v1376
    %1967 = vmatprep.subr.bf16.mxu0 %v1379
    %1968 = vmatpush1.bf16.msra.mxu0 %v1378
    %1969 = vmatprep.subr.bf16.mxu0 %v1381
    %1970 = vmatpush1.bf16.msra.mxu0 %v1380
    %1971 = vmatprep.mubr.bf16.mxu0 %v89
    %1972 = vmatmul.mubr.bf16.gmra.mrb[0].mxu0 %v88
    %v1973 = vpop.f32.mrb[0].mxu0
    %v1974 = vadd.f32 %v1931, %v1973
    %v1975 = vpop.f32.mrb[0].mxu0
    %v1976 = vadd.f32 %v1933, %v1975
    %v1977 = vpop.f32.mrb[0].mxu0
    %v1978 = vadd.f32 %v1935, %v1977
    %v1979 = vpop.f32.mrb[0].mxu0
    %v1980 = vadd.f32 %v1937, %v1979
    %1981 = vdwg.mxu0
    %1982 = vst [vmem:[%s3] sm:$0xff] %v1974
    %1983 = vst [vmem:[%s3 + $0x8] sm:$0xff] %v1976
    %1984 = vst [vmem:[%s3 + $0x10] sm:$0xff] %v1978
    %1985 = vst [vmem:[%s3 + $0x18] sm:$0xff] %v1980
    // Predicated region
    $region22: #{regressor_forward.1} parent=1 // pred_check
      _
    $region23: #{regressor_forward.1} parent=1 // pred_check_branch
      %1987 = sbr.rel (0) target = $region25
    $region24: #{regressor_forward.1} parent=1 // pred_region
      _
    $region25: #{regressor_forward.1} parent=1 // pred_fallthru
      _
    // Predicated region
    $region26: #{regressor_forward.1} parent=1 // pred_check
      _
    $region27: #{regressor_forward.1} parent=1 // pred_check_branch
      %1989 = sbr.rel (0) target = $region29
    $region28: #{regressor_forward.1} parent=1 // pred_region
      _
    $region29: #{regressor_forward.1} parent=1 // pred_fallthru
      _
    %1990 = vsyncpa [#allocation3], 1
    %1991 = vsyncpa [#allocation5], 1

</llo_original>
